<compile_context>
chip_gen: v7x
topology: tpu7x:2x2x1
jax: 0.10.0
libtpu: 0.0.40
codegen_flags: <defaults>
</compile_context>

<pallas_src>
import functools

import jax
import jax.numpy as jnp
import numpy as np
from jax import lax
from jax.experimental import pallas as pl
from jax.experimental.pallas import tpu as pltpu  # noqa: F401  (kept for clarity / future tuning)

# ----------------------------- configuration -----------------------------
BATCH = 2                    # images
INPUT_SIZE = 8               # H = W of the feature map the windows came from
C = 32                       # input_dim
NUM_HEADS = 4
WINDOW = 4                   # window_size
SHIFT = 2                    # shift_size (only used to build the example mask)

N = WINDOW * WINDOW                      # tokens per window          (16)
NW_IMG = (INPUT_SIZE // WINDOW) ** 2     # windows per image          (4)
B_TOTAL = BATCH * NW_IMG                 # batch*window_num  ("B")    (8)
HEAD_DIM = C // NUM_HEADS                # dk                         (8)
SCALE = HEAD_DIM ** (-0.5)
ROWS = B_TOTAL * N                       # total token rows           (128)
NEG = -1e9                               # cross-window blocker in the big score matrix

assert ROWS % 8 == 0 and C % NUM_HEADS == 0


# ----------------------------- host-side helpers -----------------------------
def _window_partition_np(x, ws):
    b, hh, ww, c = x.shape
    x = x.reshape(b, hh // ws, ws, ww // ws, ws, c)
    return x.transpose(0, 1, 3, 2, 4, 5).reshape(-1, ws, ws, c)


def make_relative_position_index(ws):
    coords = np.stack(np.meshgrid(np.arange(ws), np.arange(ws), indexing="ij"))
    flat = coords.reshape(2, -1)                       # [2, N]
    rel = flat[:, :, None] - flat[:, None, :]          # [2, N, N]
    rel = rel + (ws - 1)
    rel[0] = rel[0] * (2 * ws - 1)
    return (rel[0] + rel[1]).astype(np.int32)          # [N, N]


def make_shift_mask(input_size, ws, shift):
    """Standard Swin shifted-window mask: [num_windows, N, N] of {0, -100}."""
    nw = (input_size // ws) ** 2
    if shift <= 0:
        return np.zeros((nw, ws * ws, ws * ws), np.float32)
    img = np.zeros((1, input_size, input_size, 1), np.float32)
    slices = (slice(0, -ws), slice(-ws, -shift), slice(-shift, None))
    cnt = 0
    for hs in slices:
        for wsl in slices:
            img[:, hs, wsl, :] = cnt
            cnt += 1
    wm = _window_partition_np(img, ws).reshape(-1, ws * ws)       # [nW, N]
    am = wm[:, None, :] - wm[:, :, None]                          # [nW, N, N]
    return np.where(am != 0, -100.0, 0.0).astype(np.float32)


def precompute_folded_params(params, rp_index, mask):
    """One-time (init / model-load) transform.

    * folds the softmax scale into the q columns of Wqkv / bqkv (in f32),
    * pre-casts the MXU weights to bf16,
    * expands rel-pos bias + shift mask into the block-diagonal additive bias
      [H, ROWS, ROWS] used by the kernel (-1e9 on cross-window entries).
    Depends only on weights / rp_index / mask, never on x, so it is NOT part
    of the per-call forward path.
    """
    wqkv = np.asarray(params["wqkv"], np.float32).copy()
    bqkv = np.asarray(params["bqkv"], np.float32).copy()
    wqkv[:, :C] *= SCALE                          # fold scale into q projection
    bqkv[:, :C] *= SCALE

    table = np.asarray(params["rel_table"], np.float32)
    rpb = table[np.asarray(rp_index).reshape(-1)]
    rpb = rpb.reshape(N, N, NUM_HEADS).transpose(2, 0, 1)          # [H, N, N]

    if mask is None:
        bias_win = np.broadcast_to(rpb[None], (B_TOTAL, NUM_HEADS, N, N)).copy()
    else:
        m = np.asarray(mask, np.float32)
        mask_b = np.tile(m, (B_TOTAL // m.shape[0], 1, 1))         # [Bt, N, N]
        bias_win = rpb[None] + mask_b[:, None]                     # [Bt, H, N, N]

    big = np.full((NUM_HEADS, B_TOTAL, N, B_TOTAL, N), NEG, np.float32)
    for w in range(B_TOTAL):
        big[:, w, :, w, :] = bias_win[w]                           # diagonal blocks
    bias_full = big.reshape(NUM_HEADS, ROWS, ROWS)                 # [H, 128, 128]

    return {
        "wqkv": jnp.asarray(wqkv).astype(jnp.bfloat16),            # [C, 3C] bf16
        "bqkv": jnp.asarray(bqkv),                                 # [1, 3C] f32
        "wp": jnp.asarray(np.asarray(params["wp"], np.float32)).astype(jnp.bfloat16),
        "bp": jnp.asarray(np.asarray(params["bp"], np.float32)),   # [1, C] f32
        "bias": jnp.asarray(bias_full),                            # [H, R, R] f32
    }


# --------------------------------- kernel ------------------------------------
def _window_attn_kernel(x_ref, wqkv_ref, bqkv_ref, bias_ref, wp_ref, bp_ref, o_ref):
    """All B_TOTAL windows (ROWS = 128 token rows) in one shot, no grid."""
    x = x_ref[...].astype(jnp.bfloat16)                              # [R, C]
    # QKV projection: bf16 MXU inputs, f32 accumulation.  Scale already folded
    # into the q columns of wqkv / bqkv at init time.
    qkv = jnp.dot(x, wqkv_ref[...],
                  preferred_element_type=jnp.float32) + bqkv_ref[...]    # [R, 3C] f32

    wp = wp_ref[...]                                                 # [C, C] bf16
    acc = jnp.zeros((ROWS, C), jnp.float32)

    for h in range(NUM_HEADS):                                       # static 4-way unroll
        qh = qkv[:, h * HEAD_DIM:(h + 1) * HEAD_DIM].astype(jnp.bfloat16)
        kh = qkv[:, C + h * HEAD_DIM:C + (h + 1) * HEAD_DIM].astype(jnp.bfloat16)
        vh = qkv[:, 2 * C + h * HEAD_DIM:2 * C + (h + 1) * HEAD_DIM].astype(jnp.bfloat16)

        # [R, D] x [R, D] (contract D) -> [R, R]: scores of every window at once.
        s = lax.dot_general(qh, kh, (((1,), (1,)), ((), ())),
                            preferred_element_type=jnp.float32)
        # rel-pos bias + shift mask on the block diagonal, -1e9 off-diagonal,
        # so the full-row softmax equals the per-window softmax of the reference.
        s = s + bias_ref[h]
        s = s - jnp.max(s, axis=-1, keepdims=True)                   # stable softmax
        p = jnp.exp(s)
        p = p * pl.reciprocal(jnp.sum(p, axis=-1, keepdims=True), approx=True)

        ph = jnp.dot(p.astype(jnp.bfloat16), vh,
                     preferred_element_type=jnp.float32)             # [R, D]
        # proj(concat_h ph) == sum_h ph @ Wp[h*D:(h+1)*D, :]  -> no concatenate.
        acc = acc + jnp.dot(ph.astype(jnp.bfloat16),
                            wp[h * HEAD_DIM:(h + 1) * HEAD_DIM, :],
                            preferred_element_type=jnp.float32)

    o_ref[...] = (acc + bp_ref[...]).astype(o_ref.dtype)


# ------------------------------ pallas wrapper --------------------------------
def window_attention_pallas(x, folded):
    """x: [B_total, N, C] window tokens; `folded` from precompute_folded_params."""
    bt, n, c = x.shape
    assert (bt, n, c) == (B_TOTAL, N, C)
    x2 = x.reshape(bt * n, c)

    # No grid: whole (tiny) arrays live in VMEM; single kernel invocation.
    out = pl.pallas_call(
        _window_attn_kernel,
        out_shape=jax.ShapeDtypeStruct((bt * n, c), x.dtype),
    )(x2, folded["wqkv"], folded["bqkv"], folded["bias"], folded["wp"], folded["bp"])

    return out.reshape(bt, n, c)


# ----------------------------- float64 reference ------------------------------
def window_attention_reference(x, params, rp_index, mask):
    """NumPy float64 reference mirroring WindowAttention.forward line by line."""
    xd = np.asarray(x, np.float64)
    wqkv = np.asarray(params["wqkv"], np.float64)
    bqkv = np.asarray(params["bqkv"], np.float64).reshape(-1)
    table = np.asarray(params["rel_table"], np.float64)
    wp = np.asarray(params["wp"], np.float64)
    bp = np.asarray(params["bp"], np.float64).reshape(-1)

    bt, n, c = xd.shape
    qkv = xd @ wqkv + bqkv                                                # [Bt, N, 3C]
    qkv = qkv.reshape(bt, n, 3, NUM_HEADS, HEAD_DIM).transpose(2, 0, 3, 1, 4)
    q, k, v = qkv[0], qkv[1], qkv[2]                                      # [Bt, H, N, D]

    rpb = table[np.asarray(rp_index).reshape(-1)]
    rpb = rpb.reshape(n, n, NUM_HEADS).transpose(2, 0, 1)                 # [H, N, N]

    att = q @ np.swapaxes(k, -1, -2) * SCALE + rpb[None]
    if mask is not None:
        m = np.asarray(mask, np.float64)
        nw = m.shape[0]
        att = att.reshape(bt // nw, nw, NUM_HEADS, n, n) + m[None, :, None]
        att = att.reshape(bt, NUM_HEADS, n, n)
    att = att - att.max(axis=-1, keepdims=True)
    att = np.exp(att)
    att = att / att.sum(axis=-1, keepdims=True)

    out = (att @ v).transpose(0, 2, 1, 3).reshape(bt, n, c)
    return out @ wp + bp


# --------------------------------- params -------------------------------------
def init_params(key):
    ks = jax.random.split(key, 5)

    def nrm(k, shape, std):
        return (std * jax.random.normal(k, shape)).astype(jnp.float32)

    # nn.Linear weights are stored pre-transposed to [in_features, out_features].
    return {
        "wqkv": nrm(ks[0], (C, 3 * C), 0.1),
        "bqkv": nrm(ks[1], (1, 3 * C), 0.02),
        "rel_table": nrm(ks[2], ((2 * WINDOW - 1) ** 2, NUM_HEADS), 0.5),
        "wp": nrm(ks[3], (C, C), 0.1),
        "bp": nrm(ks[4], (1, C), 0.02),
    }


# ---------------------------------- main ---------------------------------------
if __name__ == "__main__":
    key = jax.random.PRNGKey(0)
    k_param, k_x = jax.random.split(key)

    params = init_params(k_param)
    # x is already window-partitioned: [batch*window_num, N, C] = [8, 16, 32]
    x = jax.random.normal(k_x, (B_TOTAL, N, C), dtype=jnp.float32)

    rp_index = make_relative_position_index(WINDOW)          # np int32 [N, N]
    mask_np = make_shift_mask(INPUT_SIZE, WINDOW, SHIFT)     # np f32 [nW, N, N]

    # One-time init: scale fold + bf16 casts + block-diagonal bias expansion.
    folded = precompute_folded_params(params, rp_index, mask_np)

    fwd = jax.jit(window_attention_pallas)
    out = jax.block_until_ready(fwd(x, folded))

    ref = window_attention_reference(x, params, rp_index, mask_np)

    assert out.shape == (B_TOTAL, N, C), out.shape
    np.testing.assert_allclose(np.asarray(out), ref, rtol=2e-2, atol=2e-2)
    print("KERNEL_OK")
</pallas_src>

<mosaic_0001>
module attributes {stable_mosaic.version = 11 : i64} {
  func.func @_window_attn_kernel(%arg0: memref<128x32xf32, #tpu.memory_space<vmem>>, %arg1: memref<32x96xbf16, #tpu.memory_space<vmem>>, %arg2: memref<1x96xf32, #tpu.memory_space<vmem>>, %arg3: memref<4x128x128xf32, #tpu.memory_space<vmem>>, %arg4: memref<32x32xbf16, #tpu.memory_space<vmem>>, %arg5: memref<1x32xf32, #tpu.memory_space<vmem>>, %arg6: memref<128x32xf32, #tpu.memory_space<vmem>>) attributes {dimension_semantics = [], scalar_prefetch = 0 : i64, scratch_operands = 0 : i64, tpu.core_type = #tpu.core_type<tc>} {
    %c0 = arith.constant 0 : index
    %c0_0 = arith.constant 0 : index
    %0 = vector.load %arg0[%c0, %c0_0] : memref<128x32xf32, #tpu.memory_space<vmem>>, vector<128x32xf32>
    %1 = arith.truncf %0 : vector<128x32xf32> to vector<128x32xbf16>
    %c0_1 = arith.constant 0 : index
    %c0_2 = arith.constant 0 : index
    %2 = vector.load %arg1[%c0_1, %c0_2] : memref<32x96xbf16, #tpu.memory_space<vmem>>, vector<32x96xbf16>
    %cst = arith.constant dense<0.000000e+00> : vector<128x96xf32>
    %3 = tpu.matmul %1, %2, %cst {dimension_numbers = #tpu.dot_dimension_numbers<[1], [0], [0], [1], [0, 0, 1, 1], [], []>} : vector<128x32xbf16>, vector<32x96xbf16>, vector<128x96xf32> -> vector<128x96xf32>
    %c0_3 = arith.constant 0 : index
    %c0_4 = arith.constant 0 : index
    %4 = vector.load %arg2[%c0_3, %c0_4] : memref<1x96xf32, #tpu.memory_space<vmem>>, vector<1x96xf32>
    %5 = vector.broadcast %4 : vector<1x96xf32> to vector<128x96xf32>
    %6 = arith.addf %3, %5 : vector<128x96xf32>
    %c0_5 = arith.constant 0 : index
    %c0_6 = arith.constant 0 : index
    %7 = vector.load %arg4[%c0_5, %c0_6] : memref<32x32xbf16, #tpu.memory_space<vmem>>, vector<32x32xbf16>
    %cst_7 = arith.constant 0.000000e+00 : f32
    %8 = vector.broadcast %cst_7 : f32 to vector<128x32xf32>
    %9 = vector.extract_strided_slice %6 {offsets = [0, 0], sizes = [128, 8], strides = [1, 1]} : vector<128x96xf32> to vector<128x8xf32>
    %10 = arith.truncf %9 : vector<128x8xf32> to vector<128x8xbf16>
    %11 = vector.extract_strided_slice %6 {offsets = [0, 32], sizes = [128, 8], strides = [1, 1]} : vector<128x96xf32> to vector<128x8xf32>
    %12 = arith.truncf %11 : vector<128x8xf32> to vector<128x8xbf16>
    %13 = vector.extract_strided_slice %6 {offsets = [0, 64], sizes = [128, 8], strides = [1, 1]} : vector<128x96xf32> to vector<128x8xf32>
    %14 = arith.truncf %13 : vector<128x8xf32> to vector<128x8xbf16>
    %cst_8 = arith.constant dense<0.000000e+00> : vector<128x128xf32>
    %15 = tpu.matmul %10, %12, %cst_8 {dimension_numbers = #tpu.dot_dimension_numbers<[1], [1], [0], [0], [0, 0, 1, 0], [], []>} : vector<128x8xbf16>, vector<128x8xbf16>, vector<128x128xf32> -> vector<128x128xf32>
    %c0_9 = arith.constant 0 : index
    %c0_10 = arith.constant 0 : index
    %c0_11 = arith.constant 0 : index
    %16 = vector.load %arg3[%c0_9, %c0_10, %c0_11] : memref<4x128x128xf32, #tpu.memory_space<vmem>>, vector<1x128x128xf32>
    %17 = vector.shape_cast %16 : vector<1x128x128xf32> to vector<128x128xf32>
    %18 = arith.addf %15, %17 : vector<128x128xf32>
    %cst_12 = arith.constant dense<0xFF800000> : vector<128xf32>
    %19 = vector.multi_reduction <maximumf>, %18, %cst_12 [1] : vector<128x128xf32> to vector<128xf32>
    %20 = vector.shape_cast %19 : vector<128xf32> to vector<128x1xf32>
    %21 = vector.broadcast %20 : vector<128x1xf32> to vector<128x128xf32>
    %22 = arith.subf %18, %21 : vector<128x128xf32>
    %23 = math.exp %22 : vector<128x128xf32>
    %cst_13 = arith.constant dense<0.000000e+00> : vector<128xf32>
    %24 = vector.multi_reduction <add>, %23, %cst_13 [1] : vector<128x128xf32> to vector<128xf32>
    %25 = vector.shape_cast %24 : vector<128xf32> to vector<128x1xf32>
    %26 = tpu.reciprocal %25 {approx = true} : vector<128x1xf32> -> vector<128x1xf32>
    %27 = vector.broadcast %26 : vector<128x1xf32> to vector<128x128xf32>
    %28 = arith.mulf %23, %27 : vector<128x128xf32>
    %29 = arith.truncf %28 : vector<128x128xf32> to vector<128x128xbf16>
    %cst_14 = arith.constant dense<0.000000e+00> : vector<128x8xf32>
    %30 = tpu.matmul %29, %14, %cst_14 {dimension_numbers = #tpu.dot_dimension_numbers<[1], [0], [0], [1], [0, 0, 1, 1], [], []>} : vector<128x128xbf16>, vector<128x8xbf16>, vector<128x8xf32> -> vector<128x8xf32>
    %31 = arith.truncf %30 : vector<128x8xf32> to vector<128x8xbf16>
    %32 = vector.extract_strided_slice %7 {offsets = [0, 0], sizes = [8, 32], strides = [1, 1]} : vector<32x32xbf16> to vector<8x32xbf16>
    %cst_15 = arith.constant dense<0.000000e+00> : vector<128x32xf32>
    %33 = tpu.matmul %31, %32, %cst_15 {dimension_numbers = #tpu.dot_dimension_numbers<[1], [0], [0], [1], [0, 0, 1, 1], [], []>} : vector<128x8xbf16>, vector<8x32xbf16>, vector<128x32xf32> -> vector<128x32xf32>
    %34 = arith.addf %8, %33 : vector<128x32xf32>
    %35 = vector.extract_strided_slice %6 {offsets = [0, 8], sizes = [128, 8], strides = [1, 1]} : vector<128x96xf32> to vector<128x8xf32>
    %36 = arith.truncf %35 : vector<128x8xf32> to vector<128x8xbf16>
    %37 = vector.extract_strided_slice %6 {offsets = [0, 40], sizes = [128, 8], strides = [1, 1]} : vector<128x96xf32> to vector<128x8xf32>
    %38 = arith.truncf %37 : vector<128x8xf32> to vector<128x8xbf16>
    %39 = vector.extract_strided_slice %6 {offsets = [0, 72], sizes = [128, 8], strides = [1, 1]} : vector<128x96xf32> to vector<128x8xf32>
    %40 = arith.truncf %39 : vector<128x8xf32> to vector<128x8xbf16>
    %cst_16 = arith.constant dense<0.000000e+00> : vector<128x128xf32>
    %41 = tpu.matmul %36, %38, %cst_16 {dimension_numbers = #tpu.dot_dimension_numbers<[1], [1], [0], [0], [0, 0, 1, 0], [], []>} : vector<128x8xbf16>, vector<128x8xbf16>, vector<128x128xf32> -> vector<128x128xf32>
    %c1 = arith.constant 1 : index
    %c0_17 = arith.constant 0 : index
    %c0_18 = arith.constant 0 : index
    %42 = vector.load %arg3[%c1, %c0_17, %c0_18] : memref<4x128x128xf32, #tpu.memory_space<vmem>>, vector<1x128x128xf32>
    %43 = vector.shape_cast %42 : vector<1x128x128xf32> to vector<128x128xf32>
    %44 = arith.addf %41, %43 : vector<128x128xf32>
    %cst_19 = arith.constant dense<0xFF800000> : vector<128xf32>
    %45 = vector.multi_reduction <maximumf>, %44, %cst_19 [1] : vector<128x128xf32> to vector<128xf32>
    %46 = vector.shape_cast %45 : vector<128xf32> to vector<128x1xf32>
    %47 = vector.broadcast %46 : vector<128x1xf32> to vector<128x128xf32>
    %48 = arith.subf %44, %47 : vector<128x128xf32>
    %49 = math.exp %48 : vector<128x128xf32>
    %cst_20 = arith.constant dense<0.000000e+00> : vector<128xf32>
    %50 = vector.multi_reduction <add>, %49, %cst_20 [1] : vector<128x128xf32> to vector<128xf32>
    %51 = vector.shape_cast %50 : vector<128xf32> to vector<128x1xf32>
    %52 = tpu.reciprocal %51 {approx = true} : vector<128x1xf32> -> vector<128x1xf32>
    %53 = vector.broadcast %52 : vector<128x1xf32> to vector<128x128xf32>
    %54 = arith.mulf %49, %53 : vector<128x128xf32>
    %55 = arith.truncf %54 : vector<128x128xf32> to vector<128x128xbf16>
    %cst_21 = arith.constant dense<0.000000e+00> : vector<128x8xf32>
    %56 = tpu.matmul %55, %40, %cst_21 {dimension_numbers = #tpu.dot_dimension_numbers<[1], [0], [0], [1], [0, 0, 1, 1], [], []>} : vector<128x128xbf16>, vector<128x8xbf16>, vector<128x8xf32> -> vector<128x8xf32>
    %57 = arith.truncf %56 : vector<128x8xf32> to vector<128x8xbf16>
    %58 = vector.extract_strided_slice %7 {offsets = [8, 0], sizes = [8, 32], strides = [1, 1]} : vector<32x32xbf16> to vector<8x32xbf16>
    %cst_22 = arith.constant dense<0.000000e+00> : vector<128x32xf32>
    %59 = tpu.matmul %57, %58, %cst_22 {dimension_numbers = #tpu.dot_dimension_numbers<[1], [0], [0], [1], [0, 0, 1, 1], [], []>} : vector<128x8xbf16>, vector<8x32xbf16>, vector<128x32xf32> -> vector<128x32xf32>
    %60 = arith.addf %34, %59 : vector<128x32xf32>
    %61 = vector.extract_strided_slice %6 {offsets = [0, 16], sizes = [128, 8], strides = [1, 1]} : vector<128x96xf32> to vector<128x8xf32>
    %62 = arith.truncf %61 : vector<128x8xf32> to vector<128x8xbf16>
    %63 = vector.extract_strided_slice %6 {offsets = [0, 48], sizes = [128, 8], strides = [1, 1]} : vector<128x96xf32> to vector<128x8xf32>
    %64 = arith.truncf %63 : vector<128x8xf32> to vector<128x8xbf16>
    %65 = vector.extract_strided_slice %6 {offsets = [0, 80], sizes = [128, 8], strides = [1, 1]} : vector<128x96xf32> to vector<128x8xf32>
    %66 = arith.truncf %65 : vector<128x8xf32> to vector<128x8xbf16>
    %cst_23 = arith.constant dense<0.000000e+00> : vector<128x128xf32>
    %67 = tpu.matmul %62, %64, %cst_23 {dimension_numbers = #tpu.dot_dimension_numbers<[1], [1], [0], [0], [0, 0, 1, 0], [], []>} : vector<128x8xbf16>, vector<128x8xbf16>, vector<128x128xf32> -> vector<128x128xf32>
    %c2 = arith.constant 2 : index
    %c0_24 = arith.constant 0 : index
    %c0_25 = arith.constant 0 : index
    %68 = vector.load %arg3[%c2, %c0_24, %c0_25] : memref<4x128x128xf32, #tpu.memory_space<vmem>>, vector<1x128x128xf32>
    %69 = vector.shape_cast %68 : vector<1x128x128xf32> to vector<128x128xf32>
    %70 = arith.addf %67, %69 : vector<128x128xf32>
    %cst_26 = arith.constant dense<0xFF800000> : vector<128xf32>
    %71 = vector.multi_reduction <maximumf>, %70, %cst_26 [1] : vector<128x128xf32> to vector<128xf32>
    %72 = vector.shape_cast %71 : vector<128xf32> to vector<128x1xf32>
    %73 = vector.broadcast %72 : vector<128x1xf32> to vector<128x128xf32>
    %74 = arith.subf %70, %73 : vector<128x128xf32>
    %75 = math.exp %74 : vector<128x128xf32>
    %cst_27 = arith.constant dense<0.000000e+00> : vector<128xf32>
    %76 = vector.multi_reduction <add>, %75, %cst_27 [1] : vector<128x128xf32> to vector<128xf32>
    %77 = vector.shape_cast %76 : vector<128xf32> to vector<128x1xf32>
    %78 = tpu.reciprocal %77 {approx = true} : vector<128x1xf32> -> vector<128x1xf32>
    %79 = vector.broadcast %78 : vector<128x1xf32> to vector<128x128xf32>
    %80 = arith.mulf %75, %79 : vector<128x128xf32>
    %81 = arith.truncf %80 : vector<128x128xf32> to vector<128x128xbf16>
    %cst_28 = arith.constant dense<0.000000e+00> : vector<128x8xf32>
    %82 = tpu.matmul %81, %66, %cst_28 {dimension_numbers = #tpu.dot_dimension_numbers<[1], [0], [0], [1], [0, 0, 1, 1], [], []>} : vector<128x128xbf16>, vector<128x8xbf16>, vector<128x8xf32> -> vector<128x8xf32>
    %83 = arith.truncf %82 : vector<128x8xf32> to vector<128x8xbf16>
    %84 = vector.extract_strided_slice %7 {offsets = [16, 0], sizes = [8, 32], strides = [1, 1]} : vector<32x32xbf16> to vector<8x32xbf16>
    %cst_29 = arith.constant dense<0.000000e+00> : vector<128x32xf32>
    %85 = tpu.matmul %83, %84, %cst_29 {dimension_numbers = #tpu.dot_dimension_numbers<[1], [0], [0], [1], [0, 0, 1, 1], [], []>} : vector<128x8xbf16>, vector<8x32xbf16>, vector<128x32xf32> -> vector<128x32xf32>
    %86 = arith.addf %60, %85 : vector<128x32xf32>
    %87 = vector.extract_strided_slice %6 {offsets = [0, 24], sizes = [128, 8], strides = [1, 1]} : vector<128x96xf32> to vector<128x8xf32>
    %88 = arith.truncf %87 : vector<128x8xf32> to vector<128x8xbf16>
    %89 = vector.extract_strided_slice %6 {offsets = [0, 56], sizes = [128, 8], strides = [1, 1]} : vector<128x96xf32> to vector<128x8xf32>
    %90 = arith.truncf %89 : vector<128x8xf32> to vector<128x8xbf16>
    %91 = vector.extract_strided_slice %6 {offsets = [0, 88], sizes = [128, 8], strides = [1, 1]} : vector<128x96xf32> to vector<128x8xf32>
    %92 = arith.truncf %91 : vector<128x8xf32> to vector<128x8xbf16>
    %cst_30 = arith.constant dense<0.000000e+00> : vector<128x128xf32>
    %93 = tpu.matmul %88, %90, %cst_30 {dimension_numbers = #tpu.dot_dimension_numbers<[1], [1], [0], [0], [0, 0, 1, 0], [], []>} : vector<128x8xbf16>, vector<128x8xbf16>, vector<128x128xf32> -> vector<128x128xf32>
    %c3 = arith.constant 3 : index
    %c0_31 = arith.constant 0 : index
    %c0_32 = arith.constant 0 : index
    %94 = vector.load %arg3[%c3, %c0_31, %c0_32] : memref<4x128x128xf32, #tpu.memory_space<vmem>>, vector<1x128x128xf32>
    %95 = vector.shape_cast %94 : vector<1x128x128xf32> to vector<128x128xf32>
    %96 = arith.addf %93, %95 : vector<128x128xf32>
    %cst_33 = arith.constant dense<0xFF800000> : vector<128xf32>
    %97 = vector.multi_reduction <maximumf>, %96, %cst_33 [1] : vector<128x128xf32> to vector<128xf32>
    %98 = vector.shape_cast %97 : vector<128xf32> to vector<128x1xf32>
    %99 = vector.broadcast %98 : vector<128x1xf32> to vector<128x128xf32>
    %100 = arith.subf %96, %99 : vector<128x128xf32>
    %101 = math.exp %100 : vector<128x128xf32>
    %cst_34 = arith.constant dense<0.000000e+00> : vector<128xf32>
    %102 = vector.multi_reduction <add>, %101, %cst_34 [1] : vector<128x128xf32> to vector<128xf32>
    %103 = vector.shape_cast %102 : vector<128xf32> to vector<128x1xf32>
    %104 = tpu.reciprocal %103 {approx = true} : vector<128x1xf32> -> vector<128x1xf32>
    %105 = vector.broadcast %104 : vector<128x1xf32> to vector<128x128xf32>
    %106 = arith.mulf %101, %105 : vector<128x128xf32>
    %107 = arith.truncf %106 : vector<128x128xf32> to vector<128x128xbf16>
    %cst_35 = arith.constant dense<0.000000e+00> : vector<128x8xf32>
    %108 = tpu.matmul %107, %92, %cst_35 {dimension_numbers = #tpu.dot_dimension_numbers<[1], [0], [0], [1], [0, 0, 1, 1], [], []>} : vector<128x128xbf16>, vector<128x8xbf16>, vector<128x8xf32> -> vector<128x8xf32>
    %109 = arith.truncf %108 : vector<128x8xf32> to vector<128x8xbf16>
    %110 = vector.extract_strided_slice %7 {offsets = [24, 0], sizes = [8, 32], strides = [1, 1]} : vector<32x32xbf16> to vector<8x32xbf16>
    %cst_36 = arith.constant dense<0.000000e+00> : vector<128x32xf32>
    %111 = tpu.matmul %109, %110, %cst_36 {dimension_numbers = #tpu.dot_dimension_numbers<[1], [0], [0], [1], [0, 0, 1, 1], [], []>} : vector<128x8xbf16>, vector<8x32xbf16>, vector<128x32xf32> -> vector<128x32xf32>
    %112 = arith.addf %86, %111 : vector<128x32xf32>
    %c0_37 = arith.constant 0 : index
    %c0_38 = arith.constant 0 : index
    %113 = vector.load %arg5[%c0_37, %c0_38] : memref<1x32xf32, #tpu.memory_space<vmem>>, vector<1x32xf32>
    %114 = vector.broadcast %113 : vector<1x32xf32> to vector<128x32xf32>
    %115 = arith.addf %112, %114 : vector<128x32xf32>
    %c0_39 = arith.constant 0 : index
    %c0_40 = arith.constant 0 : index
    %116 = vector.load %arg6[%c0_39, %c0_40] : memref<128x32xf32, #tpu.memory_space<vmem>>, vector<128x32xf32>
    tpu.vector_store %arg6[%c0_39, %c0_40], %115 {strides = array<i32>} : memref<128x32xf32, #tpu.memory_space<vmem>>, vector<128x32xf32>,
    return
  }
}

</mosaic_0001>

<llo_original>
// kernel: window_attention_pallas.1
$region0: #{window_attention_pallas.1}
  #allocation0 [shape = 'u32[]', space=smem, size = 0x4, offset = 0x4, fixed_abs, tag = 'smem constant byte address 0x4 - core index']
  #allocation1 [shape = 'u32[144,128]{1,0:T(1,128)}', space=vmem, size = 0x12000, scoped, tag = 'internal scratch']
  %s0 = inlined_call_operand.hbm [shape: f32[128,32], index: 0, kind: input, shape index: {}]
  %s1 = inlined_call_operand.vmem [shape: bf16[32,96], index: 1, kind: input, shape index: {}]
  %s2 = inlined_call_operand.vmem [shape: f32[1,96], index: 2, kind: input, shape index: {}]
  %s3 = inlined_call_operand.hbm [shape: f32[4,128,128], index: 3, kind: input, shape index: {}]
  %s4 = inlined_call_operand.hbm [shape: bf16[32,32], index: 4, kind: input, shape index: {}]
  %s5 = inlined_call_operand.vmem [shape: f32[1,32], index: 5, kind: input, shape index: {}]
  %s6 = inlined_call_operand.hbm [shape: f32[128,32], index: 6, kind: output, shape index: {}]
  %s7 = sld [smem:[#allocation0]]
  $region46: #{window_attention_pallas.1} parent=0
    _
  %s9 = ssub.s32 1, %s7
  %s10 = scalar_select 0, %s9, %s7
  $region1: #{window_attention_pallas.1} parent=0
    #allocation2 [shape = 'u8[65536]{0}', space=vmem, size = 0x10000, scoped, tag = 'input window, operand 0, single buffered']
    #allocation3 [shape = 's32[1]{0}', space=sflag, size = 0x4, scoped, tag = 'scoped memory for window_attention_pallas.1']
    #allocation4 [shape = 's32[1]{0}', space=sflag, size = 0x4, scoped, tag = 'scoped memory for window_attention_pallas.1']
    #allocation5 [shape = 'u8[262144]{0}', space=vmem, size = 0x40000, scoped, tag = 'input window, operand 3, single buffered']
    #allocation6 [shape = 's32[1]{0}', space=sflag, size = 0x4, scoped, tag = 'scoped memory for window_attention_pallas.1']
    #allocation7 [shape = 'u8[8192]{0}', space=vmem, size = 0x2000, scoped, tag = 'input window, operand 4, single buffered']
    #allocation8 [shape = 'u8[65536]{0}', space=vmem, size = 0x10000, scoped, tag = 'output window, operand 0, single buffered']
    %11 = vsyncpa [#allocation3], 0
    %12 = vsyncpa [#allocation6], 0
    %13 = vsyncpa [#allocation4], 0
    // Predicated region
    $region2: #{window_attention_pallas.1} parent=1 // pred_check
      _
    $region3: #{window_attention_pallas.1} parent=1 // pred_check_branch
      %15 = sbr.rel (0) target = $region5
    $region4: #{window_attention_pallas.1} parent=1 // pred_region
      %s17 = ssub.s32 2048, 2048
      %18 = vsyncadd [#allocation3], %s17
      %s19 = sshll.u32 [#allocation2], 4
      %s20 = int_to_ptr.vmem [resolvable:$true] %s19
      %25 = dma.hbm_to_vmem [thread:$0]  %s0, 2048, %s20, [#allocation3], 128, 128, 8
    $region5: #{window_attention_pallas.1} parent=1 // pred_fallthru
      _
    // Predicated region
    $region6: #{window_attention_pallas.1} parent=1 // pred_check
      _
    $region7: #{window_attention_pallas.1} parent=1 // pred_check_branch
      %27 = sbr.rel (0) target = $region9
    $region8: #{window_attention_pallas.1} parent=1 // pred_region
      _
    $region9: #{window_attention_pallas.1} parent=1 // pred_fallthru
      _
    // Predicated region
    $region10: #{window_attention_pallas.1} parent=1 // pred_check
      _
    $region11: #{window_attention_pallas.1} parent=1 // pred_check_branch
      %29 = sbr.rel (0) target = $region13
    $region12: #{window_attention_pallas.1} parent=1 // pred_region
      _
    $region13: #{window_attention_pallas.1} parent=1 // pred_fallthru
      _
    // Predicated region
    $region14: #{window_attention_pallas.1} parent=1 // pred_check
      _
    $region15: #{window_attention_pallas.1} parent=1 // pred_check_branch
      %31 = sbr.rel (0) target = $region17
    $region16: #{window_attention_pallas.1} parent=1 // pred_region
      %s33 = ssub.s32 8192, 8192
      %34 = vsyncadd [#allocation6], %s33
      %s35 = sshll.u32 [#allocation5], 4
      %s36 = int_to_ptr.vmem [resolvable:$true] %s35
      %41 = dma.hbm_to_vmem [thread:$0]  %s3, 8192, %s36, [#allocation6], 128, 128, 8
    $region17: #{window_attention_pallas.1} parent=1 // pred_fallthru
      _
    // Predicated region
    $region18: #{window_attention_pallas.1} parent=1 // pred_check
      _
    $region19: #{window_attention_pallas.1} parent=1 // pred_check_branch
      %43 = sbr.rel (0) target = $region21
    $region20: #{window_attention_pallas.1} parent=1 // pred_region
      %s45 = ssub.s32 256, 256
      %46 = vsyncadd [#allocation6], %s45
      %s47 = sshll.u32 [#allocation7], 4
      %s48 = int_to_ptr.vmem [resolvable:$true] %s47
      %53 = dma.hbm_to_vmem [thread:$0]  %s4, 256, %s48, [#allocation6], 64, 64, 4
    $region21: #{window_attention_pallas.1} parent=1 // pred_fallthru
      _
    // Predicated region
    $region22: #{window_attention_pallas.1} parent=1 // pred_check
      _
    $region23: #{window_attention_pallas.1} parent=1 // pred_check_branch
      %55 = sbr.rel (0) target = $region25
    $region24: #{window_attention_pallas.1} parent=1 // pred_region
      _
    $region25: #{window_attention_pallas.1} parent=1 // pred_fallthru
      _
    // Predicated region
    $region26: #{window_attention_pallas.1} parent=1 // pred_check
      _
    $region27: #{window_attention_pallas.1} parent=1 // pred_check_branch
      %57 = sbr.rel (0) target = $region29
    $region28: #{window_attention_pallas.1} parent=1 // pred_region
      %58 = dma.done [#allocation3], 2048
    $region29: #{window_attention_pallas.1} parent=1 // pred_fallthru
      _
    // Predicated region
    $region30: #{window_attention_pallas.1} parent=1 // pred_check
      _
    $region31: #{window_attention_pallas.1} parent=1 // pred_check_branch
      %60 = sbr.rel (0) target = $region33
    $region32: #{window_attention_pallas.1} parent=1 // pred_region
      %61 = dma.done [#allocation6], 8192
    $region33: #{window_attention_pallas.1} parent=1 // pred_fallthru
      _
    // Predicated region
    $region34: #{window_attention_pallas.1} parent=1 // pred_check
      _
    $region35: #{window_attention_pallas.1} parent=1 // pred_check_branch
      %63 = sbr.rel (0) target = $region37
    $region36: #{window_attention_pallas.1} parent=1 // pred_region
      %64 = dma.done [#allocation6], 256
    $region37: #{window_attention_pallas.1} parent=1 // pred_fallthru
      _
    %v66 = vld [vmem:[#allocation2] sm:$0xff]
    %v67 = vld [vmem:[#allocation2 + $0x8] sm:$0xff]
    %v68 = vld [vmem:[#allocation2 + $0x10] sm:$0xff]
    %v69 = vld [vmem:[#allocation2 + $0x18] sm:$0xff]
    %v70 = vld [vmem:[#allocation2 + $0x20] sm:$0xff]
    %v71 = vld [vmem:[#allocation2 + $0x28] sm:$0xff]
    %v72 = vld [vmem:[#allocation2 + $0x30] sm:$0xff]
    %v73 = vld [vmem:[#allocation2 + $0x38] sm:$0xff]
    %v74 = vld [vmem:[#allocation2 + $0x40] sm:$0xff]
    %v75 = vld [vmem:[#allocation2 + $0x48] sm:$0xff]
    %v76 = vld [vmem:[#allocation2 + $0x50] sm:$0xff]
    %v77 = vld [vmem:[#allocation2 + $0x58] sm:$0xff]
    %v78 = vld [vmem:[#allocation2 + $0x60] sm:$0xff]
    %v79 = vld [vmem:[#allocation2 + $0x68] sm:$0xff]
    %v80 = vld [vmem:[#allocation2 + $0x70] sm:$0xff]
    %v81 = vld [vmem:[#allocation2 + $0x78] sm:$0xff]
    %v82 = vpack.c.bf16 %v67, %v66
    %v83 = vpack.c.bf16 %v69, %v68
    %v84 = vpack.c.bf16 %v71, %v70
    %v85 = vpack.c.bf16 %v73, %v72
    %v86 = vpack.c.bf16 %v75, %v74
    %v87 = vpack.c.bf16 %v77, %v76
    %v88 = vpack.c.bf16 %v79, %v78
    %v89 = vpack.c.bf16 %v81, %v80
    %v90 = vld [vmem:[%s1] sm:$0xf]
    %v91 = vld [vmem:[%s1 + $0x4] sm:$0xf]
    %v92 = vld [vmem:[%s1 + $0x8] sm:$0xf]
    %v93 = vld [vmem:[%s1 + $0xc] sm:$0xf]
    %v94 = vld [vmem:[%s2] sm:$0x1]
    %v96 = vlaneseq
    %v97 = vshrl.u32 %v96, 7
    %v98 = vsub.s32 0, %v97
    %v99 = vrot.slane %v94, %v98
    %v105 = vunpack.c.l.b16 %v90
    %v106 = vunpack.c.l.b16 %v91
    %v107 = vunpack.c.l.b16 %v92
    %v108 = vunpack.c.l.b16 %v93
    %v109 = vpack.c.b16 %v106, %v105
    %v110 = vpack.c.b16 %v108, %v107
    %vm113 = vcmask 261120
    %v115 = vsel %vm113, %v82, 0
    %v118 = vsel %vm113, %v83, 0
    %v121 = vsel %vm113, %v84, 0
    %v124 = vsel %vm113, %v85, 0
    %v127 = vsel %vm113, %v86, 0
    %v130 = vsel %vm113, %v87, 0
    %v133 = vsel %vm113, %v88, 0
    %v136 = vsel %vm113, %v89, 0
    %138 = vmatprep.subr.bf16.mxu0 0
    %139 = vmatpush1.bf16.msra.mxu0 %v109
    %140 = vmatprep.subr.bf16.mxu0 0
    %141 = vmatpush1.bf16.msra.mxu0 %v110
    %142 = vmatprep.subr.bf16.mxu0 0
    %143 = vmatpush1.bf16.msra.mxu0 0
    %144 = vmatprep.subr.bf16.mxu0 0
    %145 = vmatpush1.bf16.msra.mxu0 0
    %146 = vmatprep.subr.bf16.mxu0 0
    %147 = vmatpush1.bf16.msra.mxu0 0
    %148 = vmatprep.subr.bf16.mxu0 0
    %149 = vmatpush1.bf16.msra.mxu0 0
    %150 = vmatprep.subr.bf16.mxu0 0
    %151 = vmatpush1.bf16.msra.mxu0 0
    %152 = vmatprep.subr.bf16.mxu0 0
    %153 = vmatpush1.bf16.msra.mxu0 0
    %154 = vmatprep.subr.bf16.mxu0 0
    %155 = vmatpush1.bf16.msra.mxu0 0
    %156 = vmatprep.subr.bf16.mxu0 0
    %157 = vmatpush1.bf16.msra.mxu0 0
    %158 = vmatprep.subr.bf16.mxu0 0
    %159 = vmatpush1.bf16.msra.mxu0 0
    %160 = vmatprep.subr.bf16.mxu0 0
    %161 = vmatpush1.bf16.msra.mxu0 0
    %162 = vmatprep.subr.bf16.mxu0 0
    %163 = vmatpush1.bf16.msra.mxu0 0
    %164 = vmatprep.subr.bf16.mxu0 0
    %165 = vmatpush1.bf16.msra.mxu0 0
    %166 = vmatprep.subr.bf16.mxu0 0
    %167 = vmatpush1.bf16.msra.mxu0 0
    %168 = vmatprep.subr.bf16.mxu0 0
    %169 = vmatpush1.bf16.msra.mxu0 0
    %170 = vmatprep.mubr.bf16.mxu0 0
    %171 = vmatmul.mubr.bf16.gmra.mrb[0].mxu0 %v115
    %v172 = vpop.f32.mrb[0].mxu0
    %v173 = vadd.f32 %v99, %v172
    %v174 = vpop.f32.mrb[0].mxu0
    %v175 = vpop.f32.mrb[0].mxu0
    %v176 = vadd.f32 %v99, %v175
    %v177 = vpop.f32.mrb[0].mxu0
    %178 = vmatprep.mubr.bf16.mxu0 0
    %179 = vmatmul.mubr.bf16.gmra.mrb[0].mxu0 %v118
    %v180 = vpop.f32.mrb[0].mxu0
    %v181 = vadd.f32 %v99, %v180
    %v182 = vpop.f32.mrb[0].mxu0
    %v183 = vpop.f32.mrb[0].mxu0
    %v184 = vadd.f32 %v99, %v183
    %v185 = vpop.f32.mrb[0].mxu0
    %186 = vmatprep.mubr.bf16.mxu0 0
    %187 = vmatmul.mubr.bf16.gmra.mrb[0].mxu0 %v121
    %v188 = vpop.f32.mrb[0].mxu0
    %v189 = vadd.f32 %v99, %v188
    %v190 = vpop.f32.mrb[0].mxu0
    %v191 = vpop.f32.mrb[0].mxu0
    %v192 = vadd.f32 %v99, %v191
    %v193 = vpop.f32.mrb[0].mxu0
    %194 = vmatprep.mubr.bf16.mxu0 0
    %195 = vmatmul.mubr.bf16.gmra.mrb[0].mxu0 %v124
    %v196 = vpop.f32.mrb[0].mxu0
    %v197 = vadd.f32 %v99, %v196
    %v198 = vpop.f32.mrb[0].mxu0
    %v199 = vpop.f32.mrb[0].mxu0
    %v200 = vadd.f32 %v99, %v199
    %v201 = vpop.f32.mrb[0].mxu0
    %202 = vmatprep.mubr.bf16.mxu0 0
    %203 = vmatmul.mubr.bf16.gmra.mrb[0].mxu0 %v127
    %v204 = vpop.f32.mrb[0].mxu0
    %v205 = vadd.f32 %v99, %v204
    %v206 = vpop.f32.mrb[0].mxu0
    %v207 = vpop.f32.mrb[0].mxu0
    %v208 = vadd.f32 %v99, %v207
    %v209 = vpop.f32.mrb[0].mxu0
    %210 = vmatprep.mubr.bf16.mxu0 0
    %211 = vmatmul.mubr.bf16.gmra.mrb[0].mxu0 %v130
    %v212 = vpop.f32.mrb[0].mxu0
    %v213 = vadd.f32 %v99, %v212
    %v214 = vpop.f32.mrb[0].mxu0
    %v215 = vpop.f32.mrb[0].mxu0
    %v216 = vadd.f32 %v99, %v215
    %v217 = vpop.f32.mrb[0].mxu0
    %218 = vmatprep.mubr.bf16.mxu0 0
    %219 = vmatmul.mubr.bf16.gmra.mrb[0].mxu0 %v133
    %v220 = vpop.f32.mrb[0].mxu0
    %v221 = vadd.f32 %v99, %v220
    %v222 = vpop.f32.mrb[0].mxu0
    %v223 = vpop.f32.mrb[0].mxu0
    %v224 = vadd.f32 %v99, %v223
    %v225 = vpop.f32.mrb[0].mxu0
    %226 = vmatprep.mubr.bf16.mxu0 0
    %227 = vmatmul.mubr.bf16.gmra.mrb[0].mxu0 %v136
    %v228 = vpop.f32.mrb[0].mxu0
    %v229 = vadd.f32 %v99, %v228
    %v230 = vpop.f32.mrb[0].mxu0
    %v231 = vpop.f32.mrb[0].mxu0
    %v232 = vadd.f32 %v99, %v231
    %v233 = vpop.f32.mrb[0].mxu0
    %234 = vdwg.mxu0
    %v235 = vld [vmem:[#allocation7] sm:$0xf]
    %v236 = vld [vmem:[#allocation7 + $0x4] sm:$0xf]
    %v237 = vld [vmem:[#allocation7 + $0x8] sm:$0xf]
    %v238 = vld [vmem:[#allocation7 + $0xc] sm:$0xf]
    %v239 = vpack.c.bf16 %v176, %v173
    %v240 = vpack.c.bf16 %v184, %v181
    %v241 = vpack.c.bf16 %v192, %v189
    %v242 = vpack.c.bf16 %v200, %v197
    %v243 = vpack.c.bf16 %v208, %v205
    %v244 = vpack.c.bf16 %v216, %v213
    %v245 = vpack.c.bf16 %v224, %v221
    %v246 = vpack.c.bf16 %v232, %v229
    %v247 = vld [vmem:[#allocation5] sm:$0xff]
    %v248 = vld [vmem:[#allocation5 + $0x8] sm:$0xff]
    %v249 = vld [vmem:[#allocation5 + $0x10] sm:$0xff]
    %v250 = vld [vmem:[#allocation5 + $0x18] sm:$0xff]
    %v251 = vld [vmem:[#allocation5 + $0x20] sm:$0xff]
    %v252 = vld [vmem:[#allocation5 + $0x28] sm:$0xff]
    %v253 = vld [vmem:[#allocation5 + $0x30] sm:$0xff]
    %v254 = vld [vmem:[#allocation5 + $0x38] sm:$0xff]
    %v255 = vld [vmem:[#allocation5 + $0x40] sm:$0xff]
    %v256 = vld [vmem:[#allocation5 + $0x48] sm:$0xff]
    %v257 = vld [vmem:[#allocation5 + $0x50] sm:$0xff]
    %v258 = vld [vmem:[#allocation5 + $0x58] sm:$0xff]
    %v259 = vld [vmem:[#allocation5 + $0x60] sm:$0xff]
    %v260 = vld [vmem:[#allocation5 + $0x68] sm:$0xff]
    %v261 = vld [vmem:[#allocation5 + $0x70] sm:$0xff]
    %v262 = vld [vmem:[#allocation5 + $0x78] sm:$0xff]
    %271 = vrot.lane.b32.xlu0 %v239, 96
    %v272 = vpop.permute.xlu0 %271
    %273 = vrot.lane.b32.xlu0 %v240, 96
    %v274 = vpop.permute.xlu0 %273
    %275 = vrot.lane.b32.xlu0 %v241, 96
    %v276 = vpop.permute.xlu0 %275
    %277 = vrot.lane.b32.xlu0 %v242, 96
    %v278 = vpop.permute.xlu0 %277
    %279 = vrot.lane.b32.xlu0 %v243, 96
    %v280 = vpop.permute.xlu0 %279
    %281 = vrot.lane.b32.xlu0 %v244, 96
    %v282 = vpop.permute.xlu0 %281
    %283 = vrot.lane.b32.xlu0 %v245, 96
    %v284 = vpop.permute.xlu0 %283
    %285 = vrot.lane.b32.xlu0 %v246, 96
    %v286 = vpop.permute.xlu0 %285
    %vm287 = vcmask 64512
    %v289 = vsel %vm287, %v239, 0
    %v292 = vsel %vm287, %v240, 0
    %v295 = vsel %vm287, %v241, 0
    %v298 = vsel %vm287, %v242, 0
    %v301 = vsel %vm287, %v243, 0
    %v304 = vsel %vm287, %v244, 0
    %v307 = vsel %vm287, %v245, 0
    %v310 = vsel %vm287, %v246, 0
    %v313 = vsel %vm287, %v272, 0
    %v316 = vsel %vm287, %v274, 0
    %v319 = vsel %vm287, %v276, 0
    %v322 = vsel %vm287, %v278, 0
    %v325 = vsel %vm287, %v280, 0
    %v328 = vsel %vm287, %v282, 0
    %v331 = vsel %vm287, %v284, 0
    %v334 = vsel %vm287, %v286, 0
    %336 = vmatprep.subr.bf16.mxu0 0
    %337 = vmatpush1.bf16.xpose.msra.mxu0 %v313
    %338 = vmatprep.subr.bf16.mxu0 0
    %339 = vmatpush1.bf16.xpose.msra.mxu0 %v316
    %340 = vmatprep.subr.bf16.mxu0 0
    %341 = vmatpush1.bf16.xpose.msra.mxu0 %v319
    %342 = vmatprep.subr.bf16.mxu0 0
    %343 = vmatpush1.bf16.xpose.msra.mxu0 %v322
    %344 = vmatprep.subr.bf16.mxu0 0
    %345 = vmatpush1.bf16.xpose.msra.mxu0 %v325
    %346 = vmatprep.subr.bf16.mxu0 0
    %347 = vmatpush1.bf16.xpose.msra.mxu0 %v328
    %348 = vmatprep.subr.bf16.mxu0 0
    %349 = vmatpush1.bf16.xpose.msra.mxu0 %v331
    %350 = vmatprep.subr.bf16.mxu0 0
    %351 = vmatpush1.bf16.xpose.msra.mxu0 %v334
    %352 = vmatprep.subr.bf16.mxu0 0
    %353 = vmatpush1.bf16.xpose.msra.mxu0 0
    %354 = vmatprep.subr.bf16.mxu0 0
    %355 = vmatpush1.bf16.xpose.msra.mxu0 0
    %356 = vmatprep.subr.bf16.mxu0 0
    %357 = vmatpush1.bf16.xpose.msra.mxu0 0
    %358 = vmatprep.subr.bf16.mxu0 0
    %359 = vmatpush1.bf16.xpose.msra.mxu0 0
    %360 = vmatprep.subr.bf16.mxu0 0
    %361 = vmatpush1.bf16.xpose.msra.mxu0 0
    %362 = vmatprep.subr.bf16.mxu0 0
    %363 = vmatpush1.bf16.xpose.msra.mxu0 0
    %364 = vmatprep.subr.bf16.mxu0 0
    %365 = vmatpush1.bf16.xpose.msra.mxu0 0
    %366 = vmatprep.subr.bf16.mxu0 0
    %367 = vmatpush1.bf16.xpose.msra.mxu0 0
    %368 = vmatprep.mubr.bf16.mxu0 0
    %369 = vmatmul.mubr.bf16.gmra.mrb[0].mxu0 %v289
    %v370 = vpop.f32.mrb[0].mxu0
    %v371 = vadd.f32 %v247, %v370
    %v372 = vpop.f32.mrb[0].mxu0
    %v373 = vpop.f32.mrb[0].mxu0
    %v374 = vadd.f32 %v248, %v373
    %v375 = vpop.f32.mrb[0].mxu0
    %376 = vmatprep.mubr.bf16.mxu0 0
    %377 = vmatmul.mubr.bf16.gmra.mrb[0].mxu0 %v292
    %v378 = vpop.f32.mrb[0].mxu0
    %v379 = vadd.f32 %v249, %v378
    %v380 = vpop.f32.mrb[0].mxu0
    %v381 = vpop.f32.mrb[0].mxu0
    %v382 = vadd.f32 %v250, %v381
    %v383 = vpop.f32.mrb[0].mxu0
    %384 = vmatprep.mubr.bf16.mxu0 0
    %385 = vmatmul.mubr.bf16.gmra.mrb[0].mxu0 %v295
    %v386 = vpop.f32.mrb[0].mxu0
    %v387 = vadd.f32 %v251, %v386
    %v388 = vpop.f32.mrb[0].mxu0
    %v389 = vpop.f32.mrb[0].mxu0
    %v390 = vadd.f32 %v252, %v389
    %v391 = vpop.f32.mrb[0].mxu0
    %392 = vmatprep.mubr.bf16.mxu0 0
    %393 = vmatmul.mubr.bf16.gmra.mrb[0].mxu0 %v298
    %v394 = vpop.f32.mrb[0].mxu0
    %v395 = vadd.f32 %v253, %v394
    %v396 = vpop.f32.mrb[0].mxu0
    %v397 = vpop.f32.mrb[0].mxu0
    %v398 = vadd.f32 %v254, %v397
    %v399 = vpop.f32.mrb[0].mxu0
    %400 = vmatprep.mubr.bf16.mxu0 0
    %401 = vmatmul.mubr.bf16.gmra.mrb[0].mxu0 %v301
    %v402 = vpop.f32.mrb[0].mxu0
    %v403 = vadd.f32 %v255, %v402
    %v404 = vpop.f32.mrb[0].mxu0
    %v405 = vpop.f32.mrb[0].mxu0
    %v406 = vadd.f32 %v256, %v405
    %v407 = vpop.f32.mrb[0].mxu0
    %408 = vmatprep.mubr.bf16.mxu0 0
    %409 = vmatmul.mubr.bf16.gmra.mrb[0].mxu0 %v304
    %v410 = vpop.f32.mrb[0].mxu0
    %v411 = vadd.f32 %v257, %v410
    %v412 = vpop.f32.mrb[0].mxu0
    %v413 = vpop.f32.mrb[0].mxu0
    %v414 = vadd.f32 %v258, %v413
    %v415 = vpop.f32.mrb[0].mxu0
    %416 = vmatprep.mubr.bf16.mxu0 0
    %417 = vmatmul.mubr.bf16.gmra.mrb[0].mxu0 %v307
    %v418 = vpop.f32.mrb[0].mxu0
    %v419 = vadd.f32 %v259, %v418
    %v420 = vpop.f32.mrb[0].mxu0
    %v421 = vpop.f32.mrb[0].mxu0
    %v422 = vadd.f32 %v260, %v421
    %v423 = vpop.f32.mrb[0].mxu0
    %424 = vmatprep.mubr.bf16.mxu0 0
    %425 = vmatmul.mubr.bf16.gmra.mrb[0].mxu0 %v310
    %v426 = vpop.f32.mrb[0].mxu0
    %v427 = vadd.f32 %v261, %v426
    %v428 = vpop.f32.mrb[0].mxu0
    %v429 = vpop.f32.mrb[0].mxu0
    %v430 = vadd.f32 %v262, %v429
    %v431 = vpop.f32.mrb[0].mxu0
    %432 = vdwg.mxu0
    %433 = vmax.xlane.f32.xlu0 %v371
    %v434 = vpop.xlane.xlu0 %433
    %435 = vmax.xlane.f32.xlu0 %v374
    %v436 = vpop.xlane.xlu0 %435
    %437 = vmax.xlane.f32.xlu0 %v379
    %v438 = vpop.xlane.xlu0 %437
    %439 = vmax.xlane.f32.xlu0 %v382
    %v440 = vpop.xlane.xlu0 %439
    %441 = vmax.xlane.f32.xlu0 %v387
    %v442 = vpop.xlane.xlu0 %441
    %443 = vmax.xlane.f32.xlu0 %v390
    %v444 = vpop.xlane.xlu0 %443
    %445 = vmax.xlane.f32.xlu0 %v395
    %v446 = vpop.xlane.xlu0 %445
    %447 = vmax.xlane.f32.xlu0 %v398
    %v448 = vpop.xlane.xlu0 %447
    %449 = vmax.xlane.f32.xlu0 %v403
    %v450 = vpop.xlane.xlu0 %449
    %451 = vmax.xlane.f32.xlu0 %v406
    %v452 = vpop.xlane.xlu0 %451
    %453 = vmax.xlane.f32.xlu0 %v411
    %v454 = vpop.xlane.xlu0 %453
    %455 = vmax.xlane.f32.xlu0 %v414
    %v456 = vpop.xlane.xlu0 %455
    %457 = vmax.xlane.f32.xlu0 %v419
    %v458 = vpop.xlane.xlu0 %457
    %459 = vmax.xlane.f32.xlu0 %v422
    %v460 = vpop.xlane.xlu0 %459
    %461 = vmax.xlane.f32.xlu0 %v427
    %v462 = vpop.xlane.xlu0 %461
    %463 = vmax.xlane.f32.xlu0 %v430
    %v464 = vpop.xlane.xlu0 %463
    %v465 = vsub.f32 %v371, %v434
    %v466 = vsub.f32 %v374, %v436
    %v467 = vsub.f32 %v379, %v438
    %v468 = vsub.f32 %v382, %v440
    %v469 = vsub.f32 %v387, %v442
    %v470 = vsub.f32 %v390, %v444
    %v471 = vsub.f32 %v395, %v446
    %v472 = vsub.f32 %v398, %v448
    %v473 = vsub.f32 %v403, %v450
    %v474 = vsub.f32 %v406, %v452
    %v475 = vsub.f32 %v411, %v454
    %v476 = vsub.f32 %v414, %v456
    %v477 = vsub.f32 %v419, %v458
    %v478 = vsub.f32 %v422, %v460
    %v479 = vsub.f32 %v427, %v462
    %v480 = vsub.f32 %v430, %v464
    %v481 = vmul.f32 %v465, 1.442695
    %v482 = vpow.pop %v481
    %v483 = vmul.f32 %v466, 1.442695
    %v484 = vpow.pop %v483
    %v485 = vmul.f32 %v467, 1.442695
    %v486 = vpow.pop %v485
    %v487 = vmul.f32 %v468, 1.442695
    %v488 = vpow.pop %v487
    %v489 = vmul.f32 %v469, 1.442695
    %v490 = vpow.pop %v489
    %v491 = vmul.f32 %v470, 1.442695
    %v492 = vpow.pop %v491
    %v493 = vmul.f32 %v471, 1.442695
    %v494 = vpow.pop %v493
    %v495 = vmul.f32 %v472, 1.442695
    %v496 = vpow.pop %v495
    %v497 = vmul.f32 %v473, 1.442695
    %v498 = vpow.pop %v497
    %v499 = vmul.f32 %v474, 1.442695
    %v500 = vpow.pop %v499
    %v501 = vmul.f32 %v475, 1.442695
    %v502 = vpow.pop %v501
    %v503 = vmul.f32 %v476, 1.442695
    %v504 = vpow.pop %v503
    %v505 = vmul.f32 %v477, 1.442695
    %v506 = vpow.pop %v505
    %v507 = vmul.f32 %v478, 1.442695
    %v508 = vpow.pop %v507
    %v509 = vmul.f32 %v479, 1.442695
    %v510 = vpow.pop %v509
    %v511 = vmul.f32 %v480, 1.442695
    %v512 = vpow.pop %v511
    %513 = vadd.xlane.f32.xlu0 %v482
    %v514 = vpop.xlane.xlu0 %513
    %515 = vadd.xlane.f32.xlu0 %v484
    %v516 = vpop.xlane.xlu0 %515
    %517 = vadd.xlane.f32.xlu0 %v486
    %v518 = vpop.xlane.xlu0 %517
    %519 = vadd.xlane.f32.xlu0 %v488
    %v520 = vpop.xlane.xlu0 %519
    %521 = vadd.xlane.f32.xlu0 %v490
    %v522 = vpop.xlane.xlu0 %521
    %523 = vadd.xlane.f32.xlu0 %v492
    %v524 = vpop.xlane.xlu0 %523
    %525 = vadd.xlane.f32.xlu0 %v494
    %v526 = vpop.xlane.xlu0 %525
    %527 = vadd.xlane.f32.xlu0 %v496
    %v528 = vpop.xlane.xlu0 %527
    %529 = vadd.xlane.f32.xlu0 %v498
    %v530 = vpop.xlane.xlu0 %529
    %531 = vadd.xlane.f32.xlu0 %v500
    %v532 = vpop.xlane.xlu0 %531
    %533 = vadd.xlane.f32.xlu0 %v502
    %v534 = vpop.xlane.xlu0 %533
    %535 = vadd.xlane.f32.xlu0 %v504
    %v536 = vpop.xlane.xlu0 %535
    %537 = vadd.xlane.f32.xlu0 %v506
    %v538 = vpop.xlane.xlu0 %537
    %539 = vadd.xlane.f32.xlu0 %v508
    %v540 = vpop.xlane.xlu0 %539
    %541 = vadd.xlane.f32.xlu0 %v510
    %v542 = vpop.xlane.xlu0 %541
    %543 = vadd.xlane.f32.xlu0 %v512
    %v544 = vpop.xlane.xlu0 %543
    %v545 = vrcp.pop %v514
    %v546 = vrcp.pop %v516
    %v547 = vrcp.pop %v518
    %v548 = vrcp.pop %v520
    %v549 = vrcp.pop %v522
    %v550 = vrcp.pop %v524
    %v551 = vrcp.pop %v526
    %v552 = vrcp.pop %v528
    %v553 = vrcp.pop %v530
    %v554 = vrcp.pop %v532
    %v555 = vrcp.pop %v534
    %v556 = vrcp.pop %v536
    %v557 = vrcp.pop %v538
    %v558 = vrcp.pop %v540
    %v559 = vrcp.pop %v542
    %v560 = vrcp.pop %v544
    %v561 = vmul.f32 %v482, %v545
    %v562 = vmul.f32 %v484, %v546
    %v563 = vmul.f32 %v486, %v547
    %v564 = vmul.f32 %v488, %v548
    %v565 = vmul.f32 %v490, %v549
    %v566 = vmul.f32 %v492, %v550
    %v567 = vmul.f32 %v494, %v551
    %v568 = vmul.f32 %v496, %v552
    %v569 = vmul.f32 %v498, %v553
    %v570 = vmul.f32 %v500, %v554
    %v571 = vmul.f32 %v502, %v555
    %v572 = vmul.f32 %v504, %v556
    %v573 = vmul.f32 %v506, %v557
    %v574 = vmul.f32 %v508, %v558
    %v575 = vmul.f32 %v510, %v559
    %v576 = vmul.f32 %v512, %v560
    %v577 = vpack.c.bf16 %v562, %v561
    %v578 = vpack.c.bf16 %v564, %v563
    %v579 = vpack.c.bf16 %v566, %v565
    %v580 = vpack.c.bf16 %v568, %v567
    %v581 = vpack.c.bf16 %v570, %v569
    %v582 = vpack.c.bf16 %v572, %v571
    %v583 = vpack.c.bf16 %v574, %v573
    %v584 = vpack.c.bf16 %v576, %v575
    %585 = vrot.lane.b32.xlu0 %v239, 64
    %v586 = vpop.permute.xlu0 %585
    %587 = vrot.lane.b32.xlu0 %v240, 64
    %v588 = vpop.permute.xlu0 %587
    %589 = vrot.lane.b32.xlu0 %v241, 64
    %v590 = vpop.permute.xlu0 %589
    %591 = vrot.lane.b32.xlu0 %v242, 64
    %v592 = vpop.permute.xlu0 %591
    %593 = vrot.lane.b32.xlu0 %v243, 64
    %v594 = vpop.permute.xlu0 %593
    %595 = vrot.lane.b32.xlu0 %v244, 64
    %v596 = vpop.permute.xlu0 %595
    %597 = vrot.lane.b32.xlu0 %v245, 64
    %v598 = vpop.permute.xlu0 %597
    %599 = vrot.lane.b32.xlu0 %v246, 64
    %v600 = vpop.permute.xlu0 %599
    %609 = vmatprep.subr.bf16.mxu0 0
    %610 = vmatpush1.bf16.msra.mxu0 %v586
    %611 = vmatprep.subr.bf16.mxu0 0
    %612 = vmatpush1.bf16.msra.mxu0 %v588
    %613 = vmatprep.subr.bf16.mxu0 0
    %614 = vmatpush1.bf16.msra.mxu0 %v590
    %615 = vmatprep.subr.bf16.mxu0 0
    %616 = vmatpush1.bf16.msra.mxu0 %v592
    %617 = vmatprep.subr.bf16.mxu0 0
    %618 = vmatpush1.bf16.msra.mxu0 %v594
    %619 = vmatprep.subr.bf16.mxu0 0
    %620 = vmatpush1.bf16.msra.mxu0 %v596
    %621 = vmatprep.subr.bf16.mxu0 0
    %622 = vmatpush1.bf16.msra.mxu0 %v598
    %623 = vmatprep.subr.bf16.mxu0 0
    %624 = vmatpush1.bf16.msra.mxu0 %v600
    %625 = vmatprep.subr.bf16.mxu0 0
    %626 = vmatpush1.bf16.msra.mxu0 0
    %627 = vmatprep.subr.bf16.mxu0 0
    %628 = vmatpush1.bf16.msra.mxu0 0
    %629 = vmatprep.subr.bf16.mxu0 0
    %630 = vmatpush1.bf16.msra.mxu0 0
    %631 = vmatprep.subr.bf16.mxu0 0
    %632 = vmatpush1.bf16.msra.mxu0 0
    %633 = vmatprep.subr.bf16.mxu0 0
    %634 = vmatpush1.bf16.msra.mxu0 0
    %635 = vmatprep.subr.bf16.mxu0 0
    %636 = vmatpush1.bf16.msra.mxu0 0
    %637 = vmatprep.subr.bf16.mxu0 0
    %638 = vmatpush1.bf16.msra.mxu0 0
    %639 = vmatprep.subr.bf16.mxu0 0
    %640 = vmatpush1.bf16.msra.mxu0 0
    %641 = vmatprep.mubr.bf16.mxu0 0
    %642 = vmatmul.mubr.bf16.gmra.mrb[0].mxu0 %v577
    %v643 = vpop.f32.mrb[0].mxu0
    %v644 = vadd.f32 0.0, %v643
    %v645 = vpop.f32.mrb[0].mxu0
    %v646 = vpop.f32.mrb[0].mxu0
    %v647 = vadd.f32 0.0, %v646
    %v648 = vpop.f32.mrb[0].mxu0
    %649 = vmatprep.mubr.bf16.mxu0 0
    %650 = vmatmul.mubr.bf16.gmra.mrb[0].mxu0 %v578
    %v651 = vpop.f32.mrb[0].mxu0
    %v652 = vadd.f32 0.0, %v651
    %v653 = vpop.f32.mrb[0].mxu0
    %v654 = vpop.f32.mrb[0].mxu0
    %v655 = vadd.f32 0.0, %v654
    %v656 = vpop.f32.mrb[0].mxu0
    %657 = vmatprep.mubr.bf16.mxu0 0
    %658 = vmatmul.mubr.bf16.gmra.mrb[0].mxu0 %v579
    %v659 = vpop.f32.mrb[0].mxu0
    %v660 = vadd.f32 0.0, %v659
    %v661 = vpop.f32.mrb[0].mxu0
    %v662 = vpop.f32.mrb[0].mxu0
    %v663 = vadd.f32 0.0, %v662
    %v664 = vpop.f32.mrb[0].mxu0
    %665 = vmatprep.mubr.bf16.mxu0 0
    %666 = vmatmul.mubr.bf16.gmra.mrb[0].mxu0 %v580
    %v667 = vpop.f32.mrb[0].mxu0
    %v668 = vadd.f32 0.0, %v667
    %v669 = vpop.f32.mrb[0].mxu0
    %v670 = vpop.f32.mrb[0].mxu0
    %v671 = vadd.f32 0.0, %v670
    %v672 = vpop.f32.mrb[0].mxu0
    %673 = vmatprep.mubr.bf16.mxu0 0
    %674 = vmatmul.mubr.bf16.gmra.mrb[0].mxu0 %v581
    %v675 = vpop.f32.mrb[0].mxu0
    %v676 = vadd.f32 0.0, %v675
    %v677 = vpop.f32.mrb[0].mxu0
    %v678 = vpop.f32.mrb[0].mxu0
    %v679 = vadd.f32 0.0, %v678
    %v680 = vpop.f32.mrb[0].mxu0
    %681 = vmatprep.mubr.bf16.mxu0 0
    %682 = vmatmul.mubr.bf16.gmra.mrb[0].mxu0 %v582
    %v683 = vpop.f32.mrb[0].mxu0
    %v684 = vadd.f32 0.0, %v683
    %v685 = vpop.f32.mrb[0].mxu0
    %v686 = vpop.f32.mrb[0].mxu0
    %v687 = vadd.f32 0.0, %v686
    %v688 = vpop.f32.mrb[0].mxu0
    %689 = vmatprep.mubr.bf16.mxu0 0
    %690 = vmatmul.mubr.bf16.gmra.mrb[0].mxu0 %v583
    %v691 = vpop.f32.mrb[0].mxu0
    %v692 = vadd.f32 0.0, %v691
    %v693 = vpop.f32.mrb[0].mxu0
    %v694 = vpop.f32.mrb[0].mxu0
    %v695 = vadd.f32 0.0, %v694
    %v696 = vpop.f32.mrb[0].mxu0
    %697 = vmatprep.mubr.bf16.mxu0 0
    %698 = vmatmul.mubr.bf16.gmra.mrb[0].mxu0 %v584
    %v699 = vpop.f32.mrb[0].mxu0
    %v700 = vadd.f32 0.0, %v699
    %v701 = vpop.f32.mrb[0].mxu0
    %v702 = vpop.f32.mrb[0].mxu0
    %v703 = vadd.f32 0.0, %v702
    %v704 = vpop.f32.mrb[0].mxu0
    %705 = vdwg.mxu0
    %v706 = vpack.c.bf16 %v647, %v644
    %v707 = vpack.c.bf16 %v655, %v652
    %v708 = vpack.c.bf16 %v663, %v660
    %v709 = vpack.c.bf16 %v671, %v668
    %v710 = vpack.c.bf16 %v679, %v676
    %v711 = vpack.c.bf16 %v687, %v684
    %v712 = vpack.c.bf16 %v695, %v692
    %v713 = vpack.c.bf16 %v703, %v700
    %s714 = scalar_lea.vmem [#allocation5], 128
    %v715 = vld [vmem:[%s714] sm:$0xff]
    %v716 = vld [vmem:[%s714 + $0x8] sm:$0xff]
    %v717 = vld [vmem:[%s714 + $0x10] sm:$0xff]
    %v718 = vld [vmem:[%s714 + $0x18] sm:$0xff]
    %v719 = vld [vmem:[%s714 + $0x20] sm:$0xff]
    %v720 = vld [vmem:[%s714 + $0x28] sm:$0xff]
    %v721 = vld [vmem:[%s714 + $0x30] sm:$0xff]
    %v722 = vld [vmem:[%s714 + $0x38] sm:$0xff]
    %v723 = vld [vmem:[%s714 + $0x40] sm:$0xff]
    %v724 = vld [vmem:[%s714 + $0x48] sm:$0xff]
    %v725 = vld [vmem:[%s714 + $0x50] sm:$0xff]
    %v726 = vld [vmem:[%s714 + $0x58] sm:$0xff]
    %v727 = vld [vmem:[%s714 + $0x60] sm:$0xff]
    %v728 = vld [vmem:[%s714 + $0x68] sm:$0xff]
    %v729 = vld [vmem:[%s714 + $0x70] sm:$0xff]
    %v730 = vld [vmem:[%s714 + $0x78] sm:$0xff]
    %731 = vrot.lane.b32.xlu0 %v239, 120
    %v732 = vpop.permute.xlu0 %731
    %733 = vrot.lane.b32.xlu0 %v240, 120
    %v734 = vpop.permute.xlu0 %733
    %735 = vrot.lane.b32.xlu0 %v241, 120
    %v736 = vpop.permute.xlu0 %735
    %737 = vrot.lane.b32.xlu0 %v242, 120
    %v738 = vpop.permute.xlu0 %737
    %739 = vrot.lane.b32.xlu0 %v243, 120
    %v740 = vpop.permute.xlu0 %739
    %741 = vrot.lane.b32.xlu0 %v244, 120
    %v742 = vpop.permute.xlu0 %741
    %743 = vrot.lane.b32.xlu0 %v245, 120
    %v744 = vpop.permute.xlu0 %743
    %745 = vrot.lane.b32.xlu0 %v246, 120
    %v746 = vpop.permute.xlu0 %745
    %747 = vrot.lane.b32.xlu0 %v239, 88
    %v748 = vpop.permute.xlu0 %747
    %749 = vrot.lane.b32.xlu0 %v240, 88
    %v750 = vpop.permute.xlu0 %749
    %751 = vrot.lane.b32.xlu0 %v241, 88
    %v752 = vpop.permute.xlu0 %751
    %753 = vrot.lane.b32.xlu0 %v242, 88
    %v754 = vpop.permute.xlu0 %753
    %755 = vrot.lane.b32.xlu0 %v243, 88
    %v756 = vpop.permute.xlu0 %755
    %757 = vrot.lane.b32.xlu0 %v244, 88
    %v758 = vpop.permute.xlu0 %757
    %759 = vrot.lane.b32.xlu0 %v245, 88
    %v760 = vpop.permute.xlu0 %759
    %761 = vrot.lane.b32.xlu0 %v246, 88
    %v762 = vpop.permute.xlu0 %761
    %v764 = vsel %vm287, %v732, 0
    %v767 = vsel %vm287, %v734, 0
    %v770 = vsel %vm287, %v736, 0
    %v773 = vsel %vm287, %v738, 0
    %v776 = vsel %vm287, %v740, 0
    %v779 = vsel %vm287, %v742, 0
    %v782 = vsel %vm287, %v744, 0
    %v785 = vsel %vm287, %v746, 0
    %v788 = vsel %vm287, %v748, 0
    %v791 = vsel %vm287, %v750, 0
    %v794 = vsel %vm287, %v752, 0
    %v797 = vsel %vm287, %v754, 0
    %v800 = vsel %vm287, %v756, 0
    %v803 = vsel %vm287, %v758, 0
    %v806 = vsel %vm287, %v760, 0
    %v809 = vsel %vm287, %v762, 0
    %811 = vmatprep.subr.bf16.mxu0 0
    %812 = vmatpush1.bf16.xpose.msra.mxu0 %v788
    %813 = vmatprep.subr.bf16.mxu0 0
    %814 = vmatpush1.bf16.xpose.msra.mxu0 %v791
    %815 = vmatprep.subr.bf16.mxu0 0
    %816 = vmatpush1.bf16.xpose.msra.mxu0 %v794
    %817 = vmatprep.subr.bf16.mxu0 0
    %818 = vmatpush1.bf16.xpose.msra.mxu0 %v797
    %819 = vmatprep.subr.bf16.mxu0 0
    %820 = vmatpush1.bf16.xpose.msra.mxu0 %v800
    %821 = vmatprep.subr.bf16.mxu0 0
    %822 = vmatpush1.bf16.xpose.msra.mxu0 %v803
    %823 = vmatprep.subr.bf16.mxu0 0
    %824 = vmatpush1.bf16.xpose.msra.mxu0 %v806
    %825 = vmatprep.subr.bf16.mxu0 0
    %826 = vmatpush1.bf16.xpose.msra.mxu0 %v809
    %827 = vmatprep.subr.bf16.mxu0 0
    %828 = vmatpush1.bf16.xpose.msra.mxu0 0
    %829 = vmatprep.subr.bf16.mxu0 0
    %830 = vmatpush1.bf16.xpose.msra.mxu0 0
    %831 = vmatprep.subr.bf16.mxu0 0
    %832 = vmatpush1.bf16.xpose.msra.mxu0 0
    %833 = vmatprep.subr.bf16.mxu0 0
    %834 = vmatpush1.bf16.xpose.msra.mxu0 0
    %835 = vmatprep.subr.bf16.mxu0 0
    %836 = vmatpush1.bf16.xpose.msra.mxu0 0
    %837 = vmatprep.subr.bf16.mxu0 0
    %838 = vmatpush1.bf16.xpose.msra.mxu0 0
    %839 = vmatprep.subr.bf16.mxu0 0
    %840 = vmatpush1.bf16.xpose.msra.mxu0 0
    %841 = vmatprep.subr.bf16.mxu0 0
    %842 = vmatpush1.bf16.xpose.msra.mxu0 0
    %843 = vmatprep.mubr.bf16.mxu0 0
    %844 = vmatmul.mubr.bf16.gmra.mrb[0].mxu0 %v764
    %v845 = vpop.f32.mrb[0].mxu0
    %v846 = vadd.f32 %v715, %v845
    %v847 = vpop.f32.mrb[0].mxu0
    %v848 = vpop.f32.mrb[0].mxu0
    %v849 = vadd.f32 %v716, %v848
    %v850 = vpop.f32.mrb[0].mxu0
    %851 = vmatprep.mubr.bf16.mxu0 0
    %852 = vmatmul.mubr.bf16.gmra.mrb[0].mxu0 %v767
    %v853 = vpop.f32.mrb[0].mxu0
    %v854 = vadd.f32 %v717, %v853
    %v855 = vpop.f32.mrb[0].mxu0
    %v856 = vpop.f32.mrb[0].mxu0
    %v857 = vadd.f32 %v718, %v856
    %v858 = vpop.f32.mrb[0].mxu0
    %859 = vmatprep.mubr.bf16.mxu0 0
    %860 = vmatmul.mubr.bf16.gmra.mrb[0].mxu0 %v770
    %v861 = vpop.f32.mrb[0].mxu0
    %v862 = vadd.f32 %v719, %v861
    %v863 = vpop.f32.mrb[0].mxu0
    %v864 = vpop.f32.mrb[0].mxu0
    %v865 = vadd.f32 %v720, %v864
    %v866 = vpop.f32.mrb[0].mxu0
    %867 = vmatprep.mubr.bf16.mxu0 0
    %868 = vmatmul.mubr.bf16.gmra.mrb[0].mxu0 %v773
    %v869 = vpop.f32.mrb[0].mxu0
    %v870 = vadd.f32 %v721, %v869
    %v871 = vpop.f32.mrb[0].mxu0
    %v872 = vpop.f32.mrb[0].mxu0
    %v873 = vadd.f32 %v722, %v872
    %v874 = vpop.f32.mrb[0].mxu0
    %875 = vmatprep.mubr.bf16.mxu0 0
    %876 = vmatmul.mubr.bf16.gmra.mrb[0].mxu0 %v776
    %v877 = vpop.f32.mrb[0].mxu0
    %v878 = vadd.f32 %v723, %v877
    %v879 = vpop.f32.mrb[0].mxu0
    %v880 = vpop.f32.mrb[0].mxu0
    %v881 = vadd.f32 %v724, %v880
    %v882 = vpop.f32.mrb[0].mxu0
    %883 = vmatprep.mubr.bf16.mxu0 0
    %884 = vmatmul.mubr.bf16.gmra.mrb[0].mxu0 %v779
    %v885 = vpop.f32.mrb[0].mxu0
    %v886 = vadd.f32 %v725, %v885
    %v887 = vpop.f32.mrb[0].mxu0
    %v888 = vpop.f32.mrb[0].mxu0
    %v889 = vadd.f32 %v726, %v888
    %v890 = vpop.f32.mrb[0].mxu0
    %891 = vmatprep.mubr.bf16.mxu0 0
    %892 = vmatmul.mubr.bf16.gmra.mrb[0].mxu0 %v782
    %v893 = vpop.f32.mrb[0].mxu0
    %v894 = vadd.f32 %v727, %v893
    %v895 = vpop.f32.mrb[0].mxu0
    %v896 = vpop.f32.mrb[0].mxu0
    %v897 = vadd.f32 %v728, %v896
    %v898 = vpop.f32.mrb[0].mxu0
    %899 = vmatprep.mubr.bf16.mxu0 0
    %900 = vmatmul.mubr.bf16.gmra.mrb[0].mxu0 %v785
    %v901 = vpop.f32.mrb[0].mxu0
    %v902 = vadd.f32 %v729, %v901
    %v903 = vpop.f32.mrb[0].mxu0
    %v904 = vpop.f32.mrb[0].mxu0
    %v905 = vadd.f32 %v730, %v904
    %v906 = vpop.f32.mrb[0].mxu0
    %907 = vdwg.mxu0
    %908 = vmax.xlane.f32.xlu0 %v846
    %v909 = vpop.xlane.xlu0 %908
    %910 = vmax.xlane.f32.xlu0 %v849
    %v911 = vpop.xlane.xlu0 %910
    %912 = vmax.xlane.f32.xlu0 %v854
    %v913 = vpop.xlane.xlu0 %912
    %914 = vmax.xlane.f32.xlu0 %v857
    %v915 = vpop.xlane.xlu0 %914
    %916 = vmax.xlane.f32.xlu0 %v862
    %v917 = vpop.xlane.xlu0 %916
    %918 = vmax.xlane.f32.xlu0 %v865
    %v919 = vpop.xlane.xlu0 %918
    %920 = vmax.xlane.f32.xlu0 %v870
    %v921 = vpop.xlane.xlu0 %920
    %922 = vmax.xlane.f32.xlu0 %v873
    %v923 = vpop.xlane.xlu0 %922
    %924 = vmax.xlane.f32.xlu0 %v878
    %v925 = vpop.xlane.xlu0 %924
    %926 = vmax.xlane.f32.xlu0 %v881
    %v927 = vpop.xlane.xlu0 %926
    %928 = vmax.xlane.f32.xlu0 %v886
    %v929 = vpop.xlane.xlu0 %928
    %930 = vmax.xlane.f32.xlu0 %v889
    %v931 = vpop.xlane.xlu0 %930
    %932 = vmax.xlane.f32.xlu0 %v894
    %v933 = vpop.xlane.xlu0 %932
    %934 = vmax.xlane.f32.xlu0 %v897
    %v935 = vpop.xlane.xlu0 %934
    %936 = vmax.xlane.f32.xlu0 %v902
    %v937 = vpop.xlane.xlu0 %936
    %938 = vmax.xlane.f32.xlu0 %v905
    %v939 = vpop.xlane.xlu0 %938
    %v940 = vsub.f32 %v846, %v909
    %v941 = vsub.f32 %v849, %v911
    %v942 = vsub.f32 %v854, %v913
    %v943 = vsub.f32 %v857, %v915
    %v944 = vsub.f32 %v862, %v917
    %v945 = vsub.f32 %v865, %v919
    %v946 = vsub.f32 %v870, %v921
    %v947 = vsub.f32 %v873, %v923
    %v948 = vsub.f32 %v878, %v925
    %v949 = vsub.f32 %v881, %v927
    %v950 = vsub.f32 %v886, %v929
    %v951 = vsub.f32 %v889, %v931
    %v952 = vsub.f32 %v894, %v933
    %v953 = vsub.f32 %v897, %v935
    %v954 = vsub.f32 %v902, %v937
    %v955 = vsub.f32 %v905, %v939
    %v956 = vmul.f32 %v940, 1.442695
    %v957 = vpow.pop %v956
    %v958 = vmul.f32 %v941, 1.442695
    %v959 = vpow.pop %v958
    %v960 = vmul.f32 %v942, 1.442695
    %v961 = vpow.pop %v960
    %v962 = vmul.f32 %v943, 1.442695
    %v963 = vpow.pop %v962
    %v964 = vmul.f32 %v944, 1.442695
    %v965 = vpow.pop %v964
    %v966 = vmul.f32 %v945, 1.442695
    %v967 = vpow.pop %v966
    %v968 = vmul.f32 %v946, 1.442695
    %v969 = vpow.pop %v968
    %v970 = vmul.f32 %v947, 1.442695
    %v971 = vpow.pop %v970
    %v972 = vmul.f32 %v948, 1.442695
    %v973 = vpow.pop %v972
    %v974 = vmul.f32 %v949, 1.442695
    %v975 = vpow.pop %v974
    %v976 = vmul.f32 %v950, 1.442695
    %v977 = vpow.pop %v976
    %v978 = vmul.f32 %v951, 1.442695
    %v979 = vpow.pop %v978
    %v980 = vmul.f32 %v952, 1.442695
    %v981 = vpow.pop %v980
    %v982 = vmul.f32 %v953, 1.442695
    %v983 = vpow.pop %v982
    %v984 = vmul.f32 %v954, 1.442695
    %v985 = vpow.pop %v984
    %v986 = vmul.f32 %v955, 1.442695
    %v987 = vpow.pop %v986
    %988 = vadd.xlane.f32.xlu0 %v957
    %v989 = vpop.xlane.xlu0 %988
    %990 = vadd.xlane.f32.xlu0 %v959
    %v991 = vpop.xlane.xlu0 %990
    %992 = vadd.xlane.f32.xlu0 %v961
    %v993 = vpop.xlane.xlu0 %992
    %994 = vadd.xlane.f32.xlu0 %v963
    %v995 = vpop.xlane.xlu0 %994
    %996 = vadd.xlane.f32.xlu0 %v965
    %v997 = vpop.xlane.xlu0 %996
    %998 = vadd.xlane.f32.xlu0 %v967
    %v999 = vpop.xlane.xlu0 %998
    %1000 = vadd.xlane.f32.xlu0 %v969
    %v1001 = vpop.xlane.xlu0 %1000
    %1002 = vadd.xlane.f32.xlu0 %v971
    %v1003 = vpop.xlane.xlu0 %1002
    %1004 = vadd.xlane.f32.xlu0 %v973
    %v1005 = vpop.xlane.xlu0 %1004
    %1006 = vadd.xlane.f32.xlu0 %v975
    %v1007 = vpop.xlane.xlu0 %1006
    %1008 = vadd.xlane.f32.xlu0 %v977
    %v1009 = vpop.xlane.xlu0 %1008
    %1010 = vadd.xlane.f32.xlu0 %v979
    %v1011 = vpop.xlane.xlu0 %1010
    %1012 = vadd.xlane.f32.xlu0 %v981
    %v1013 = vpop.xlane.xlu0 %1012
    %1014 = vadd.xlane.f32.xlu0 %v983
    %v1015 = vpop.xlane.xlu0 %1014
    %1016 = vadd.xlane.f32.xlu0 %v985
    %v1017 = vpop.xlane.xlu0 %1016
    %1018 = vadd.xlane.f32.xlu0 %v987
    %v1019 = vpop.xlane.xlu0 %1018
    %v1020 = vrcp.pop %v989
    %v1021 = vrcp.pop %v991
    %v1022 = vrcp.pop %v993
    %v1023 = vrcp.pop %v995
    %v1024 = vrcp.pop %v997
    %v1025 = vrcp.pop %v999
    %v1026 = vrcp.pop %v1001
    %v1027 = vrcp.pop %v1003
    %v1028 = vrcp.pop %v1005
    %v1029 = vrcp.pop %v1007
    %v1030 = vrcp.pop %v1009
    %v1031 = vrcp.pop %v1011
    %v1032 = vrcp.pop %v1013
    %v1033 = vrcp.pop %v1015
    %v1034 = vrcp.pop %v1017
    %v1035 = vrcp.pop %v1019
    %v1036 = vmul.f32 %v957, %v1020
    %v1037 = vmul.f32 %v959, %v1021
    %v1038 = vmul.f32 %v961, %v1022
    %v1039 = vmul.f32 %v963, %v1023
    %v1040 = vmul.f32 %v965, %v1024
    %v1041 = vmul.f32 %v967, %v1025
    %v1042 = vmul.f32 %v969, %v1026
    %v1043 = vmul.f32 %v971, %v1027
    %v1044 = vmul.f32 %v973, %v1028
    %v1045 = vmul.f32 %v975, %v1029
    %v1046 = vmul.f32 %v977, %v1030
    %v1047 = vmul.f32 %v979, %v1031
    %v1048 = vmul.f32 %v981, %v1032
    %v1049 = vmul.f32 %v983, %v1033
    %v1050 = vmul.f32 %v985, %v1034
    %v1051 = vmul.f32 %v987, %v1035
    %v1052 = vpack.c.bf16 %v1037, %v1036
    %v1053 = vpack.c.bf16 %v1039, %v1038
    %v1054 = vpack.c.bf16 %v1041, %v1040
    %v1055 = vpack.c.bf16 %v1043, %v1042
    %v1056 = vpack.c.bf16 %v1045, %v1044
    %v1057 = vpack.c.bf16 %v1047, %v1046
    %v1058 = vpack.c.bf16 %v1049, %v1048
    %v1059 = vpack.c.bf16 %v1051, %v1050
    %1060 = vrot.lane.b32.xlu0 %v239, 56
    %v1061 = vpop.permute.xlu0 %1060
    %1062 = vrot.lane.b32.xlu0 %v240, 56
    %v1063 = vpop.permute.xlu0 %1062
    %1064 = vrot.lane.b32.xlu0 %v241, 56
    %v1065 = vpop.permute.xlu0 %1064
    %1066 = vrot.lane.b32.xlu0 %v242, 56
    %v1067 = vpop.permute.xlu0 %1066
    %1068 = vrot.lane.b32.xlu0 %v243, 56
    %v1069 = vpop.permute.xlu0 %1068
    %1070 = vrot.lane.b32.xlu0 %v244, 56
    %v1071 = vpop.permute.xlu0 %1070
    %1072 = vrot.lane.b32.xlu0 %v245, 56
    %v1073 = vpop.permute.xlu0 %1072
    %1074 = vrot.lane.b32.xlu0 %v246, 56
    %v1075 = vpop.permute.xlu0 %1074
    %1084 = vmatprep.subr.bf16.mxu0 0
    %1085 = vmatpush1.bf16.msra.mxu0 %v1061
    %1086 = vmatprep.subr.bf16.mxu0 0
    %1087 = vmatpush1.bf16.msra.mxu0 %v1063
    %1088 = vmatprep.subr.bf16.mxu0 0
    %1089 = vmatpush1.bf16.msra.mxu0 %v1065
    %1090 = vmatprep.subr.bf16.mxu0 0
    %1091 = vmatpush1.bf16.msra.mxu0 %v1067
    %1092 = vmatprep.subr.bf16.mxu0 0
    %1093 = vmatpush1.bf16.msra.mxu0 %v1069
    %1094 = vmatprep.subr.bf16.mxu0 0
    %1095 = vmatpush1.bf16.msra.mxu0 %v1071
    %1096 = vmatprep.subr.bf16.mxu0 0
    %1097 = vmatpush1.bf16.msra.mxu0 %v1073
    %1098 = vmatprep.subr.bf16.mxu0 0
    %1099 = vmatpush1.bf16.msra.mxu0 %v1075
    %1100 = vmatprep.subr.bf16.mxu0 0
    %1101 = vmatpush1.bf16.msra.mxu0 0
    %1102 = vmatprep.subr.bf16.mxu0 0
    %1103 = vmatpush1.bf16.msra.mxu0 0
    %1104 = vmatprep.subr.bf16.mxu0 0
    %1105 = vmatpush1.bf16.msra.mxu0 0
    %1106 = vmatprep.subr.bf16.mxu0 0
    %1107 = vmatpush1.bf16.msra.mxu0 0
    %1108 = vmatprep.subr.bf16.mxu0 0
    %1109 = vmatpush1.bf16.msra.mxu0 0
    %1110 = vmatprep.subr.bf16.mxu0 0
    %1111 = vmatpush1.bf16.msra.mxu0 0
    %1112 = vmatprep.subr.bf16.mxu0 0
    %1113 = vmatpush1.bf16.msra.mxu0 0
    %1114 = vmatprep.subr.bf16.mxu0 0
    %1115 = vmatpush1.bf16.msra.mxu0 0
    %1116 = vmatprep.mubr.bf16.mxu0 0
    %1117 = vmatmul.mubr.bf16.gmra.mrb[0].mxu0 %v1052
    %v1118 = vpop.f32.mrb[0].mxu0
    %v1119 = vadd.f32 0.0, %v1118
    %v1120 = vpop.f32.mrb[0].mxu0
    %v1121 = vpop.f32.mrb[0].mxu0
    %v1122 = vadd.f32 0.0, %v1121
    %v1123 = vpop.f32.mrb[0].mxu0
    %1124 = vmatprep.mubr.bf16.mxu0 0
    %1125 = vmatmul.mubr.bf16.gmra.mrb[0].mxu0 %v1053
    %v1126 = vpop.f32.mrb[0].mxu0
    %v1127 = vadd.f32 0.0, %v1126
    %v1128 = vpop.f32.mrb[0].mxu0
    %v1129 = vpop.f32.mrb[0].mxu0
    %v1130 = vadd.f32 0.0, %v1129
    %v1131 = vpop.f32.mrb[0].mxu0
    %1132 = vmatprep.mubr.bf16.mxu0 0
    %1133 = vmatmul.mubr.bf16.gmra.mrb[0].mxu0 %v1054
    %v1134 = vpop.f32.mrb[0].mxu0
    %v1135 = vadd.f32 0.0, %v1134
    %v1136 = vpop.f32.mrb[0].mxu0
    %v1137 = vpop.f32.mrb[0].mxu0
    %v1138 = vadd.f32 0.0, %v1137
    %v1139 = vpop.f32.mrb[0].mxu0
    %1140 = vmatprep.mubr.bf16.mxu0 0
    %1141 = vmatmul.mubr.bf16.gmra.mrb[0].mxu0 %v1055
    %v1142 = vpop.f32.mrb[0].mxu0
    %v1143 = vadd.f32 0.0, %v1142
    %v1144 = vpop.f32.mrb[0].mxu0
    %v1145 = vpop.f32.mrb[0].mxu0
    %v1146 = vadd.f32 0.0, %v1145
    %v1147 = vpop.f32.mrb[0].mxu0
    %1148 = vmatprep.mubr.bf16.mxu0 0
    %1149 = vmatmul.mubr.bf16.gmra.mrb[0].mxu0 %v1056
    %v1150 = vpop.f32.mrb[0].mxu0
    %v1151 = vadd.f32 0.0, %v1150
    %v1152 = vpop.f32.mrb[0].mxu0
    %v1153 = vpop.f32.mrb[0].mxu0
    %v1154 = vadd.f32 0.0, %v1153
    %v1155 = vpop.f32.mrb[0].mxu0
    %1156 = vmatprep.mubr.bf16.mxu0 0
    %1157 = vmatmul.mubr.bf16.gmra.mrb[0].mxu0 %v1057
    %v1158 = vpop.f32.mrb[0].mxu0
    %v1159 = vadd.f32 0.0, %v1158
    %v1160 = vpop.f32.mrb[0].mxu0
    %v1161 = vpop.f32.mrb[0].mxu0
    %v1162 = vadd.f32 0.0, %v1161
    %v1163 = vpop.f32.mrb[0].mxu0
    %1164 = vmatprep.mubr.bf16.mxu0 0
    %1165 = vmatmul.mubr.bf16.gmra.mrb[0].mxu0 %v1058
    %v1166 = vpop.f32.mrb[0].mxu0
    %v1167 = vadd.f32 0.0, %v1166
    %v1168 = vpop.f32.mrb[0].mxu0
    %v1169 = vpop.f32.mrb[0].mxu0
    %v1170 = vadd.f32 0.0, %v1169
    %v1171 = vpop.f32.mrb[0].mxu0
    %1172 = vmatprep.mubr.bf16.mxu0 0
    %1173 = vmatmul.mubr.bf16.gmra.mrb[0].mxu0 %v1059
    %v1174 = vpop.f32.mrb[0].mxu0
    %v1175 = vadd.f32 0.0, %v1174
    %v1176 = vpop.f32.mrb[0].mxu0
    %v1177 = vpop.f32.mrb[0].mxu0
    %v1178 = vadd.f32 0.0, %v1177
    %v1179 = vpop.f32.mrb[0].mxu0
    %1180 = vdwg.mxu0
    %v1181 = vpack.c.bf16 %v1122, %v1119
    %v1182 = vpack.c.bf16 %v1130, %v1127
    %v1183 = vpack.c.bf16 %v1138, %v1135
    %v1184 = vpack.c.bf16 %v1146, %v1143
    %v1185 = vpack.c.bf16 %v1154, %v1151
    %v1186 = vpack.c.bf16 %v1162, %v1159
    %v1187 = vpack.c.bf16 %v1170, %v1167
    %v1188 = vpack.c.bf16 %v1178, %v1175
    %v1190 = vsel %vm287, %v1181, 0
    %v1193 = vsel %vm287, %v1182, 0
    %v1196 = vsel %vm287, %v1183, 0
    %v1199 = vsel %vm287, %v1184, 0
    %v1202 = vsel %vm287, %v1185, 0
    %v1205 = vsel %vm287, %v1186, 0
    %v1208 = vsel %vm287, %v1187, 0
    %v1211 = vsel %vm287, %v1188, 0
    %vm1213 = vcmask 1043456
    %v1215 = vsel %vm1213, %v236, 0
    %1217 = vmatprep.subr.bf16.mxu0 0
    %1218 = vmatpush1.bf16.msra.mxu0 %v1215
    %1219 = vmatprep.subr.bf16.mxu0 0
    %1220 = vmatpush1.bf16.msra.mxu0 0
    %1221 = vmatprep.subr.bf16.mxu0 0
    %1222 = vmatpush1.bf16.msra.mxu0 0
    %1223 = vmatprep.subr.bf16.mxu0 0
    %1224 = vmatpush1.bf16.msra.mxu0 0
    %1225 = vmatprep.subr.bf16.mxu0 0
    %1226 = vmatpush1.bf16.msra.mxu0 0
    %1227 = vmatprep.subr.bf16.mxu0 0
    %1228 = vmatpush1.bf16.msra.mxu0 0
    %1229 = vmatprep.subr.bf16.mxu0 0
    %1230 = vmatpush1.bf16.msra.mxu0 0
    %1231 = vmatprep.subr.bf16.mxu0 0
    %1232 = vmatpush1.bf16.msra.mxu0 0
    %1233 = vmatprep.subr.bf16.mxu0 0
    %1234 = vmatpush1.bf16.msra.mxu0 0
    %1235 = vmatprep.subr.bf16.mxu0 0
    %1236 = vmatpush1.bf16.msra.mxu0 0
    %1237 = vmatprep.subr.bf16.mxu0 0
    %1238 = vmatpush1.bf16.msra.mxu0 0
    %1239 = vmatprep.subr.bf16.mxu0 0
    %1240 = vmatpush1.bf16.msra.mxu0 0
    %1241 = vmatprep.subr.bf16.mxu0 0
    %1242 = vmatpush1.bf16.msra.mxu0 0
    %1243 = vmatprep.subr.bf16.mxu0 0
    %1244 = vmatpush1.bf16.msra.mxu0 0
    %1245 = vmatprep.subr.bf16.mxu0 0
    %1246 = vmatpush1.bf16.msra.mxu0 0
    %1247 = vmatprep.subr.bf16.mxu0 0
    %1248 = vmatpush1.bf16.msra.mxu0 0
    %1249 = vmatprep.mubr.bf16.mxu0 0
    %1250 = vmatmul.mubr.bf16.gmra.mrb[0].mxu0 %v1190
    %v1251 = vpop.f32.mrb[0].mxu0
    %v1252 = vadd.f32 0.0, %v1251
    %v1253 = vpop.f32.mrb[0].mxu0
    %v1254 = vpop.f32.mrb[0].mxu0
    %v1255 = vadd.f32 0.0, %v1254
    %v1256 = vpop.f32.mrb[0].mxu0
    %1257 = vmatprep.mubr.bf16.mxu0 0
    %1258 = vmatmul.mubr.bf16.gmra.mrb[0].mxu0 %v1193
    %v1259 = vpop.f32.mrb[0].mxu0
    %v1260 = vadd.f32 0.0, %v1259
    %v1261 = vpop.f32.mrb[0].mxu0
    %v1262 = vpop.f32.mrb[0].mxu0
    %v1263 = vadd.f32 0.0, %v1262
    %v1264 = vpop.f32.mrb[0].mxu0
    %1265 = vmatprep.mubr.bf16.mxu0 0
    %1266 = vmatmul.mubr.bf16.gmra.mrb[0].mxu0 %v1196
    %v1267 = vpop.f32.mrb[0].mxu0
    %v1268 = vadd.f32 0.0, %v1267
    %v1269 = vpop.f32.mrb[0].mxu0
    %v1270 = vpop.f32.mrb[0].mxu0
    %v1271 = vadd.f32 0.0, %v1270
    %v1272 = vpop.f32.mrb[0].mxu0
    %1273 = vmatprep.mubr.bf16.mxu0 0
    %1274 = vmatmul.mubr.bf16.gmra.mrb[0].mxu0 %v1199
    %v1275 = vpop.f32.mrb[0].mxu0
    %v1276 = vadd.f32 0.0, %v1275
    %v1277 = vpop.f32.mrb[0].mxu0
    %v1278 = vpop.f32.mrb[0].mxu0
    %v1279 = vadd.f32 0.0, %v1278
    %v1280 = vpop.f32.mrb[0].mxu0
    %1281 = vmatprep.mubr.bf16.mxu0 0
    %1282 = vmatmul.mubr.bf16.gmra.mrb[0].mxu0 %v1202
    %v1283 = vpop.f32.mrb[0].mxu0
    %v1284 = vadd.f32 0.0, %v1283
    %v1285 = vpop.f32.mrb[0].mxu0
    %v1286 = vpop.f32.mrb[0].mxu0
    %v1287 = vadd.f32 0.0, %v1286
    %v1288 = vpop.f32.mrb[0].mxu0
    %1289 = vmatprep.mubr.bf16.mxu0 0
    %1290 = vmatmul.mubr.bf16.gmra.mrb[0].mxu0 %v1205
    %v1291 = vpop.f32.mrb[0].mxu0
    %v1292 = vadd.f32 0.0, %v1291
    %v1293 = vpop.f32.mrb[0].mxu0
    %v1294 = vpop.f32.mrb[0].mxu0
    %v1295 = vadd.f32 0.0, %v1294
    %v1296 = vpop.f32.mrb[0].mxu0
    %1297 = vmatprep.mubr.bf16.mxu0 0
    %1298 = vmatmul.mubr.bf16.gmra.mrb[0].mxu0 %v1208
    %v1299 = vpop.f32.mrb[0].mxu0
    %v1300 = vadd.f32 0.0, %v1299
    %v1301 = vpop.f32.mrb[0].mxu0
    %v1302 = vpop.f32.mrb[0].mxu0
    %v1303 = vadd.f32 0.0, %v1302
    %v1304 = vpop.f32.mrb[0].mxu0
    %1305 = vmatprep.mubr.bf16.mxu0 0
    %1306 = vmatmul.mubr.bf16.gmra.mrb[0].mxu0 %v1211
    %v1307 = vpop.f32.mrb[0].mxu0
    %v1308 = vadd.f32 0.0, %v1307
    %v1309 = vpop.f32.mrb[0].mxu0
    %v1310 = vpop.f32.mrb[0].mxu0
    %v1311 = vadd.f32 0.0, %v1310
    %v1312 = vpop.f32.mrb[0].mxu0
    %1313 = vdwg.mxu0
    %v1315 = vsel %vm287, %v706, 0
    %v1318 = vsel %vm287, %v707, 0
    %v1321 = vsel %vm287, %v708, 0
    %v1324 = vsel %vm287, %v709, 0
    %v1327 = vsel %vm287, %v710, 0
    %v1330 = vsel %vm287, %v711, 0
    %v1333 = vsel %vm287, %v712, 0
    %v1336 = vsel %vm287, %v713, 0
    %v1339 = vsel %vm1213, %v235, 0
    %1341 = vmatprep.subr.bf16.mxu0 0
    %1342 = vmatpush1.bf16.msra.mxu0 %v1339
    %1343 = vmatprep.subr.bf16.mxu0 0
    %1344 = vmatpush1.bf16.msra.mxu0 0
    %1345 = vmatprep.subr.bf16.mxu0 0
    %1346 = vmatpush1.bf16.msra.mxu0 0
    %1347 = vmatprep.subr.bf16.mxu0 0
    %1348 = vmatpush1.bf16.msra.mxu0 0
    %1349 = vmatprep.subr.bf16.mxu0 0
    %1350 = vmatpush1.bf16.msra.mxu0 0
    %1351 = vmatprep.subr.bf16.mxu0 0
    %1352 = vmatpush1.bf16.msra.mxu0 0
    %1353 = vmatprep.subr.bf16.mxu0 0
    %1354 = vmatpush1.bf16.msra.mxu0 0
    %1355 = vmatprep.subr.bf16.mxu0 0
    %1356 = vmatpush1.bf16.msra.mxu0 0
    %1357 = vmatprep.subr.bf16.mxu0 0
    %1358 = vmatpush1.bf16.msra.mxu0 0
    %1359 = vmatprep.subr.bf16.mxu0 0
    %1360 = vmatpush1.bf16.msra.mxu0 0
    %1361 = vmatprep.subr.bf16.mxu0 0
    %1362 = vmatpush1.bf16.msra.mxu0 0
    %1363 = vmatprep.subr.bf16.mxu0 0
    %1364 = vmatpush1.bf16.msra.mxu0 0
    %1365 = vmatprep.subr.bf16.mxu0 0
    %1366 = vmatpush1.bf16.msra.mxu0 0
    %1367 = vmatprep.subr.bf16.mxu0 0
    %1368 = vmatpush1.bf16.msra.mxu0 0
    %1369 = vmatprep.subr.bf16.mxu0 0
    %1370 = vmatpush1.bf16.msra.mxu0 0
    %1371 = vmatprep.subr.bf16.mxu0 0
    %1372 = vmatpush1.bf16.msra.mxu0 0
    %1373 = vmatprep.mubr.bf16.mxu0 0
    %1374 = vmatmul.mubr.bf16.gmra.mrb[0].mxu0 %v1315
    %v1375 = vpop.f32.mrb[0].mxu0
    %v1376 = vadd.f32 %v1252, %v1375
    %v1377 = vpop.f32.mrb[0].mxu0
    %v1378 = vpop.f32.mrb[0].mxu0
    %v1379 = vadd.f32 %v1255, %v1378
    %v1380 = vpop.f32.mrb[0].mxu0
    %1381 = vmatprep.mubr.bf16.mxu0 0
    %1382 = vmatmul.mubr.bf16.gmra.mrb[0].mxu0 %v1318
    %v1383 = vpop.f32.mrb[0].mxu0
    %v1384 = vadd.f32 %v1260, %v1383
    %v1385 = vpop.f32.mrb[0].mxu0
    %v1386 = vpop.f32.mrb[0].mxu0
    %v1387 = vadd.f32 %v1263, %v1386
    %v1388 = vpop.f32.mrb[0].mxu0
    %1389 = vmatprep.mubr.bf16.mxu0 0
    %1390 = vmatmul.mubr.bf16.gmra.mrb[0].mxu0 %v1321
    %v1391 = vpop.f32.mrb[0].mxu0
    %v1392 = vadd.f32 %v1268, %v1391
    %v1393 = vpop.f32.mrb[0].mxu0
    %v1394 = vpop.f32.mrb[0].mxu0
    %v1395 = vadd.f32 %v1271, %v1394
    %v1396 = vpop.f32.mrb[0].mxu0
    %1397 = vmatprep.mubr.bf16.mxu0 0
    %1398 = vmatmul.mubr.bf16.gmra.mrb[0].mxu0 %v1324
    %v1399 = vpop.f32.mrb[0].mxu0
    %v1400 = vadd.f32 %v1276, %v1399
    %v1401 = vpop.f32.mrb[0].mxu0
    %v1402 = vpop.f32.mrb[0].mxu0
    %v1403 = vadd.f32 %v1279, %v1402
    %v1404 = vpop.f32.mrb[0].mxu0
    %1405 = vmatprep.mubr.bf16.mxu0 0
    %1406 = vmatmul.mubr.bf16.gmra.mrb[0].mxu0 %v1327
    %v1407 = vpop.f32.mrb[0].mxu0
    %v1408 = vadd.f32 %v1284, %v1407
    %v1409 = vpop.f32.mrb[0].mxu0
    %v1410 = vpop.f32.mrb[0].mxu0
    %v1411 = vadd.f32 %v1287, %v1410
    %v1412 = vpop.f32.mrb[0].mxu0
    %1413 = vmatprep.mubr.bf16.mxu0 0
    %1414 = vmatmul.mubr.bf16.gmra.mrb[0].mxu0 %v1330
    %v1415 = vpop.f32.mrb[0].mxu0
    %v1416 = vadd.f32 %v1292, %v1415
    %v1417 = vpop.f32.mrb[0].mxu0
    %v1418 = vpop.f32.mrb[0].mxu0
    %v1419 = vadd.f32 %v1295, %v1418
    %v1420 = vpop.f32.mrb[0].mxu0
    %1421 = vmatprep.mubr.bf16.mxu0 0
    %1422 = vmatmul.mubr.bf16.gmra.mrb[0].mxu0 %v1333
    %v1423 = vpop.f32.mrb[0].mxu0
    %v1424 = vadd.f32 %v1300, %v1423
    %v1425 = vpop.f32.mrb[0].mxu0
    %v1426 = vpop.f32.mrb[0].mxu0
    %v1427 = vadd.f32 %v1303, %v1426
    %v1428 = vpop.f32.mrb[0].mxu0
    %1429 = vmatprep.mubr.bf16.mxu0 0
    %1430 = vmatmul.mubr.bf16.gmra.mrb[0].mxu0 %v1336
    %v1431 = vpop.f32.mrb[0].mxu0
    %v1432 = vadd.f32 %v1308, %v1431
    %v1433 = vpop.f32.mrb[0].mxu0
    %v1434 = vpop.f32.mrb[0].mxu0
    %v1435 = vadd.f32 %v1311, %v1434
    %v1436 = vpop.f32.mrb[0].mxu0
    %1437 = vdwg.mxu0
    %s1438 = scalar_lea.vmem [#allocation5], 256
    %v1439 = vld [vmem:[%s1438] sm:$0xff]
    %v1440 = vld [vmem:[%s1438 + $0x8] sm:$0xff]
    %v1441 = vld [vmem:[%s1438 + $0x10] sm:$0xff]
    %v1442 = vld [vmem:[%s1438 + $0x18] sm:$0xff]
    %v1443 = vld [vmem:[%s1438 + $0x20] sm:$0xff]
    %v1444 = vld [vmem:[%s1438 + $0x28] sm:$0xff]
    %v1445 = vld [vmem:[%s1438 + $0x30] sm:$0xff]
    %v1446 = vld [vmem:[%s1438 + $0x38] sm:$0xff]
    %v1447 = vld [vmem:[%s1438 + $0x40] sm:$0xff]
    %v1448 = vld [vmem:[%s1438 + $0x48] sm:$0xff]
    %v1449 = vld [vmem:[%s1438 + $0x50] sm:$0xff]
    %v1450 = vld [vmem:[%s1438 + $0x58] sm:$0xff]
    %v1451 = vld [vmem:[%s1438 + $0x60] sm:$0xff]
    %v1452 = vld [vmem:[%s1438 + $0x68] sm:$0xff]
    %v1453 = vld [vmem:[%s1438 + $0x70] sm:$0xff]
    %v1454 = vld [vmem:[%s1438 + $0x78] sm:$0xff]
    %1455 = vrot.lane.b32.xlu0 %v239, 112
    %v1456 = vpop.permute.xlu0 %1455
    %1457 = vrot.lane.b32.xlu0 %v240, 112
    %v1458 = vpop.permute.xlu0 %1457
    %1459 = vrot.lane.b32.xlu0 %v241, 112
    %v1460 = vpop.permute.xlu0 %1459
    %1461 = vrot.lane.b32.xlu0 %v242, 112
    %v1462 = vpop.permute.xlu0 %1461
    %1463 = vrot.lane.b32.xlu0 %v243, 112
    %v1464 = vpop.permute.xlu0 %1463
    %1465 = vrot.lane.b32.xlu0 %v244, 112
    %v1466 = vpop.permute.xlu0 %1465
    %1467 = vrot.lane.b32.xlu0 %v245, 112
    %v1468 = vpop.permute.xlu0 %1467
    %1469 = vrot.lane.b32.xlu0 %v246, 112
    %v1470 = vpop.permute.xlu0 %1469
    %1471 = vrot.lane.b32.xlu0 %v239, 80
    %v1472 = vpop.permute.xlu0 %1471
    %1473 = vrot.lane.b32.xlu0 %v240, 80
    %v1474 = vpop.permute.xlu0 %1473
    %1475 = vrot.lane.b32.xlu0 %v241, 80
    %v1476 = vpop.permute.xlu0 %1475
    %1477 = vrot.lane.b32.xlu0 %v242, 80
    %v1478 = vpop.permute.xlu0 %1477
    %1479 = vrot.lane.b32.xlu0 %v243, 80
    %v1480 = vpop.permute.xlu0 %1479
    %1481 = vrot.lane.b32.xlu0 %v244, 80
    %v1482 = vpop.permute.xlu0 %1481
    %1483 = vrot.lane.b32.xlu0 %v245, 80
    %v1484 = vpop.permute.xlu0 %1483
    %1485 = vrot.lane.b32.xlu0 %v246, 80
    %v1486 = vpop.permute.xlu0 %1485
    %v1488 = vsel %vm287, %v1456, 0
    %v1491 = vsel %vm287, %v1458, 0
    %v1494 = vsel %vm287, %v1460, 0
    %v1497 = vsel %vm287, %v1462, 0
    %v1500 = vsel %vm287, %v1464, 0
    %v1503 = vsel %vm287, %v1466, 0
    %v1506 = vsel %vm287, %v1468, 0
    %v1509 = vsel %vm287, %v1470, 0
    %v1512 = vsel %vm287, %v1472, 0
    %v1515 = vsel %vm287, %v1474, 0
    %v1518 = vsel %vm287, %v1476, 0
    %v1521 = vsel %vm287, %v1478, 0
    %v1524 = vsel %vm287, %v1480, 0
    %v1527 = vsel %vm287, %v1482, 0
    %v1530 = vsel %vm287, %v1484, 0
    %v1533 = vsel %vm287, %v1486, 0
    %1535 = vmatprep.subr.bf16.mxu0 0
    %1536 = vmatpush1.bf16.xpose.msra.mxu0 %v1512
    %1537 = vmatprep.subr.bf16.mxu0 0
    %1538 = vmatpush1.bf16.xpose.msra.mxu0 %v1515
    %1539 = vmatprep.subr.bf16.mxu0 0
    %1540 = vmatpush1.bf16.xpose.msra.mxu0 %v1518
    %1541 = vmatprep.subr.bf16.mxu0 0
    %1542 = vmatpush1.bf16.xpose.msra.mxu0 %v1521
    %1543 = vmatprep.subr.bf16.mxu0 0
    %1544 = vmatpush1.bf16.xpose.msra.mxu0 %v1524
    %1545 = vmatprep.subr.bf16.mxu0 0
    %1546 = vmatpush1.bf16.xpose.msra.mxu0 %v1527
    %1547 = vmatprep.subr.bf16.mxu0 0
    %1548 = vmatpush1.bf16.xpose.msra.mxu0 %v1530
    %1549 = vmatprep.subr.bf16.mxu0 0
    %1550 = vmatpush1.bf16.xpose.msra.mxu0 %v1533
    %1551 = vmatprep.subr.bf16.mxu0 0
    %1552 = vmatpush1.bf16.xpose.msra.mxu0 0
    %1553 = vmatprep.subr.bf16.mxu0 0
    %1554 = vmatpush1.bf16.xpose.msra.mxu0 0
    %1555 = vmatprep.subr.bf16.mxu0 0
    %1556 = vmatpush1.bf16.xpose.msra.mxu0 0
    %1557 = vmatprep.subr.bf16.mxu0 0
    %1558 = vmatpush1.bf16.xpose.msra.mxu0 0
    %1559 = vmatprep.subr.bf16.mxu0 0
    %1560 = vmatpush1.bf16.xpose.msra.mxu0 0
    %1561 = vmatprep.subr.bf16.mxu0 0
    %1562 = vmatpush1.bf16.xpose.msra.mxu0 0
    %1563 = vmatprep.subr.bf16.mxu0 0
    %1564 = vmatpush1.bf16.xpose.msra.mxu0 0
    %1565 = vmatprep.subr.bf16.mxu0 0
    %1566 = vmatpush1.bf16.xpose.msra.mxu0 0
    %1567 = vmatprep.mubr.bf16.mxu0 0
    %1568 = vmatmul.mubr.bf16.gmra.mrb[0].mxu0 %v1488
    %v1569 = vpop.f32.mrb[0].mxu0
    %v1570 = vadd.f32 %v1439, %v1569
    %v1571 = vpop.f32.mrb[0].mxu0
    %v1572 = vpop.f32.mrb[0].mxu0
    %v1573 = vadd.f32 %v1440, %v1572
    %v1574 = vpop.f32.mrb[0].mxu0
    %1575 = vmatprep.mubr.bf16.mxu0 0
    %1576 = vmatmul.mubr.bf16.gmra.mrb[0].mxu0 %v1491
    %v1577 = vpop.f32.mrb[0].mxu0
    %v1578 = vadd.f32 %v1441, %v1577
    %v1579 = vpop.f32.mrb[0].mxu0
    %v1580 = vpop.f32.mrb[0].mxu0
    %v1581 = vadd.f32 %v1442, %v1580
    %v1582 = vpop.f32.mrb[0].mxu0
    %1583 = vmatprep.mubr.bf16.mxu0 0
    %1584 = vmatmul.mubr.bf16.gmra.mrb[0].mxu0 %v1494
    %v1585 = vpop.f32.mrb[0].mxu0
    %v1586 = vadd.f32 %v1443, %v1585
    %v1587 = vpop.f32.mrb[0].mxu0
    %v1588 = vpop.f32.mrb[0].mxu0
    %v1589 = vadd.f32 %v1444, %v1588
    %v1590 = vpop.f32.mrb[0].mxu0
    %1591 = vmatprep.mubr.bf16.mxu0 0
    %1592 = vmatmul.mubr.bf16.gmra.mrb[0].mxu0 %v1497
    %v1593 = vpop.f32.mrb[0].mxu0
    %v1594 = vadd.f32 %v1445, %v1593
    %v1595 = vpop.f32.mrb[0].mxu0
    %v1596 = vpop.f32.mrb[0].mxu0
    %v1597 = vadd.f32 %v1446, %v1596
    %v1598 = vpop.f32.mrb[0].mxu0
    %1599 = vmatprep.mubr.bf16.mxu0 0
    %1600 = vmatmul.mubr.bf16.gmra.mrb[0].mxu0 %v1500
    %v1601 = vpop.f32.mrb[0].mxu0
    %v1602 = vadd.f32 %v1447, %v1601
    %v1603 = vpop.f32.mrb[0].mxu0
    %v1604 = vpop.f32.mrb[0].mxu0
    %v1605 = vadd.f32 %v1448, %v1604
    %v1606 = vpop.f32.mrb[0].mxu0
    %1607 = vmatprep.mubr.bf16.mxu0 0
    %1608 = vmatmul.mubr.bf16.gmra.mrb[0].mxu0 %v1503
    %v1609 = vpop.f32.mrb[0].mxu0
    %v1610 = vadd.f32 %v1449, %v1609
    %v1611 = vpop.f32.mrb[0].mxu0
    %v1612 = vpop.f32.mrb[0].mxu0
    %v1613 = vadd.f32 %v1450, %v1612
    %v1614 = vpop.f32.mrb[0].mxu0
    %1615 = vmatprep.mubr.bf16.mxu0 0
    %1616 = vmatmul.mubr.bf16.gmra.mrb[0].mxu0 %v1506
    %v1617 = vpop.f32.mrb[0].mxu0
    %v1618 = vadd.f32 %v1451, %v1617
    %v1619 = vpop.f32.mrb[0].mxu0
    %v1620 = vpop.f32.mrb[0].mxu0
    %v1621 = vadd.f32 %v1452, %v1620
    %v1622 = vpop.f32.mrb[0].mxu0
    %1623 = vmatprep.mubr.bf16.mxu0 0
    %1624 = vmatmul.mubr.bf16.gmra.mrb[0].mxu0 %v1509
    %v1625 = vpop.f32.mrb[0].mxu0
    %v1626 = vadd.f32 %v1453, %v1625
    %v1627 = vpop.f32.mrb[0].mxu0
    %v1628 = vpop.f32.mrb[0].mxu0
    %v1629 = vadd.f32 %v1454, %v1628
    %v1630 = vpop.f32.mrb[0].mxu0
    %1631 = vdwg.mxu0
    %1632 = vmax.xlane.f32.xlu0 %v1570
    %v1633 = vpop.xlane.xlu0 %1632
    %1634 = vmax.xlane.f32.xlu0 %v1573
    %v1635 = vpop.xlane.xlu0 %1634
    %1636 = vmax.xlane.f32.xlu0 %v1578
    %v1637 = vpop.xlane.xlu0 %1636
    %1638 = vmax.xlane.f32.xlu0 %v1581
    %v1639 = vpop.xlane.xlu0 %1638
    %1640 = vmax.xlane.f32.xlu0 %v1586
    %v1641 = vpop.xlane.xlu0 %1640
    %1642 = vmax.xlane.f32.xlu0 %v1589
    %v1643 = vpop.xlane.xlu0 %1642
    %1644 = vmax.xlane.f32.xlu0 %v1594
    %v1645 = vpop.xlane.xlu0 %1644
    %1646 = vmax.xlane.f32.xlu0 %v1597
    %v1647 = vpop.xlane.xlu0 %1646
    %1648 = vmax.xlane.f32.xlu0 %v1602
    %v1649 = vpop.xlane.xlu0 %1648
    %1650 = vmax.xlane.f32.xlu0 %v1605
    %v1651 = vpop.xlane.xlu0 %1650
    %1652 = vmax.xlane.f32.xlu0 %v1610
    %v1653 = vpop.xlane.xlu0 %1652
    %1654 = vmax.xlane.f32.xlu0 %v1613
    %v1655 = vpop.xlane.xlu0 %1654
    %1656 = vmax.xlane.f32.xlu0 %v1618
    %v1657 = vpop.xlane.xlu0 %1656
    %1658 = vmax.xlane.f32.xlu0 %v1621
    %v1659 = vpop.xlane.xlu0 %1658
    %1660 = vmax.xlane.f32.xlu0 %v1626
    %v1661 = vpop.xlane.xlu0 %1660
    %1662 = vmax.xlane.f32.xlu0 %v1629
    %v1663 = vpop.xlane.xlu0 %1662
    %v1664 = vsub.f32 %v1570, %v1633
    %v1665 = vsub.f32 %v1573, %v1635
    %v1666 = vsub.f32 %v1578, %v1637
    %v1667 = vsub.f32 %v1581, %v1639
    %v1668 = vsub.f32 %v1586, %v1641
    %v1669 = vsub.f32 %v1589, %v1643
    %v1670 = vsub.f32 %v1594, %v1645
    %v1671 = vsub.f32 %v1597, %v1647
    %v1672 = vsub.f32 %v1602, %v1649
    %v1673 = vsub.f32 %v1605, %v1651
    %v1674 = vsub.f32 %v1610, %v1653
    %v1675 = vsub.f32 %v1613, %v1655
    %v1676 = vsub.f32 %v1618, %v1657
    %v1677 = vsub.f32 %v1621, %v1659
    %v1678 = vsub.f32 %v1626, %v1661
    %v1679 = vsub.f32 %v1629, %v1663
    %v1680 = vmul.f32 %v1664, 1.442695
    %v1681 = vpow.pop %v1680
    %v1682 = vmul.f32 %v1665, 1.442695
    %v1683 = vpow.pop %v1682
    %v1684 = vmul.f32 %v1666, 1.442695
    %v1685 = vpow.pop %v1684
    %v1686 = vmul.f32 %v1667, 1.442695
    %v1687 = vpow.pop %v1686
    %v1688 = vmul.f32 %v1668, 1.442695
    %v1689 = vpow.pop %v1688
    %v1690 = vmul.f32 %v1669, 1.442695
    %v1691 = vpow.pop %v1690
    %v1692 = vmul.f32 %v1670, 1.442695
    %v1693 = vpow.pop %v1692
    %v1694 = vmul.f32 %v1671, 1.442695
    %v1695 = vpow.pop %v1694
    %v1696 = vmul.f32 %v1672, 1.442695
    %v1697 = vpow.pop %v1696
    %v1698 = vmul.f32 %v1673, 1.442695
    %v1699 = vpow.pop %v1698
    %v1700 = vmul.f32 %v1674, 1.442695
    %v1701 = vpow.pop %v1700
    %v1702 = vmul.f32 %v1675, 1.442695
    %v1703 = vpow.pop %v1702
    %v1704 = vmul.f32 %v1676, 1.442695
    %v1705 = vpow.pop %v1704
    %v1706 = vmul.f32 %v1677, 1.442695
    %v1707 = vpow.pop %v1706
    %v1708 = vmul.f32 %v1678, 1.442695
    %v1709 = vpow.pop %v1708
    %v1710 = vmul.f32 %v1679, 1.442695
    %v1711 = vpow.pop %v1710
    %1712 = vadd.xlane.f32.xlu0 %v1681
    %v1713 = vpop.xlane.xlu0 %1712
    %1714 = vadd.xlane.f32.xlu0 %v1683
    %v1715 = vpop.xlane.xlu0 %1714
    %1716 = vadd.xlane.f32.xlu0 %v1685
    %v1717 = vpop.xlane.xlu0 %1716
    %1718 = vadd.xlane.f32.xlu0 %v1687
    %v1719 = vpop.xlane.xlu0 %1718
    %1720 = vadd.xlane.f32.xlu0 %v1689
    %v1721 = vpop.xlane.xlu0 %1720
    %1722 = vadd.xlane.f32.xlu0 %v1691
    %v1723 = vpop.xlane.xlu0 %1722
    %1724 = vadd.xlane.f32.xlu0 %v1693
    %v1725 = vpop.xlane.xlu0 %1724
    %1726 = vadd.xlane.f32.xlu0 %v1695
    %v1727 = vpop.xlane.xlu0 %1726
    %1728 = vadd.xlane.f32.xlu0 %v1697
    %v1729 = vpop.xlane.xlu0 %1728
    %1730 = vadd.xlane.f32.xlu0 %v1699
    %v1731 = vpop.xlane.xlu0 %1730
    %1732 = vadd.xlane.f32.xlu0 %v1701
    %v1733 = vpop.xlane.xlu0 %1732
    %1734 = vadd.xlane.f32.xlu0 %v1703
    %v1735 = vpop.xlane.xlu0 %1734
    %1736 = vadd.xlane.f32.xlu0 %v1705
    %v1737 = vpop.xlane.xlu0 %1736
    %1738 = vadd.xlane.f32.xlu0 %v1707
    %v1739 = vpop.xlane.xlu0 %1738
    %1740 = vadd.xlane.f32.xlu0 %v1709
    %v1741 = vpop.xlane.xlu0 %1740
    %1742 = vadd.xlane.f32.xlu0 %v1711
    %v1743 = vpop.xlane.xlu0 %1742
    %v1744 = vrcp.pop %v1713
    %v1745 = vrcp.pop %v1715
    %v1746 = vrcp.pop %v1717
    %v1747 = vrcp.pop %v1719
    %v1748 = vrcp.pop %v1721
    %v1749 = vrcp.pop %v1723
    %v1750 = vrcp.pop %v1725
    %v1751 = vrcp.pop %v1727
    %v1752 = vrcp.pop %v1729
    %v1753 = vrcp.pop %v1731
    %v1754 = vrcp.pop %v1733
    %v1755 = vrcp.pop %v1735
    %v1756 = vrcp.pop %v1737
    %v1757 = vrcp.pop %v1739
    %v1758 = vrcp.pop %v1741
    %v1759 = vrcp.pop %v1743
    %v1760 = vmul.f32 %v1681, %v1744
    %v1761 = vmul.f32 %v1683, %v1745
    %v1762 = vmul.f32 %v1685, %v1746
    %v1763 = vmul.f32 %v1687, %v1747
    %v1764 = vmul.f32 %v1689, %v1748
    %v1765 = vmul.f32 %v1691, %v1749
    %v1766 = vmul.f32 %v1693, %v1750
    %v1767 = vmul.f32 %v1695, %v1751
    %v1768 = vmul.f32 %v1697, %v1752
    %v1769 = vmul.f32 %v1699, %v1753
    %v1770 = vmul.f32 %v1701, %v1754
    %v1771 = vmul.f32 %v1703, %v1755
    %v1772 = vmul.f32 %v1705, %v1756
    %v1773 = vmul.f32 %v1707, %v1757
    %v1774 = vmul.f32 %v1709, %v1758
    %v1775 = vmul.f32 %v1711, %v1759
    %v1776 = vpack.c.bf16 %v1761, %v1760
    %v1777 = vpack.c.bf16 %v1763, %v1762
    %v1778 = vpack.c.bf16 %v1765, %v1764
    %v1779 = vpack.c.bf16 %v1767, %v1766
    %v1780 = vpack.c.bf16 %v1769, %v1768
    %v1781 = vpack.c.bf16 %v1771, %v1770
    %v1782 = vpack.c.bf16 %v1773, %v1772
    %v1783 = vpack.c.bf16 %v1775, %v1774
    %1784 = vrot.lane.b32.xlu0 %v239, 48
    %v1785 = vpop.permute.xlu0 %1784
    %1786 = vrot.lane.b32.xlu0 %v240, 48
    %v1787 = vpop.permute.xlu0 %1786
    %1788 = vrot.lane.b32.xlu0 %v241, 48
    %v1789 = vpop.permute.xlu0 %1788
    %1790 = vrot.lane.b32.xlu0 %v242, 48
    %v1791 = vpop.permute.xlu0 %1790
    %1792 = vrot.lane.b32.xlu0 %v243, 48
    %v1793 = vpop.permute.xlu0 %1792
    %1794 = vrot.lane.b32.xlu0 %v244, 48
    %v1795 = vpop.permute.xlu0 %1794
    %1796 = vrot.lane.b32.xlu0 %v245, 48
    %v1797 = vpop.permute.xlu0 %1796
    %1798 = vrot.lane.b32.xlu0 %v246, 48
    %v1799 = vpop.permute.xlu0 %1798
    %1808 = vmatprep.subr.bf16.mxu0 0
    %1809 = vmatpush1.bf16.msra.mxu0 %v1785
    %1810 = vmatprep.subr.bf16.mxu0 0
    %1811 = vmatpush1.bf16.msra.mxu0 %v1787
    %1812 = vmatprep.subr.bf16.mxu0 0
    %1813 = vmatpush1.bf16.msra.mxu0 %v1789
    %1814 = vmatprep.subr.bf16.mxu0 0
    %1815 = vmatpush1.bf16.msra.mxu0 %v1791
    %1816 = vmatprep.subr.bf16.mxu0 0
    %1817 = vmatpush1.bf16.msra.mxu0 %v1793
    %1818 = vmatprep.subr.bf16.mxu0 0
    %1819 = vmatpush1.bf16.msra.mxu0 %v1795
    %1820 = vmatprep.subr.bf16.mxu0 0
    %1821 = vmatpush1.bf16.msra.mxu0 %v1797
    %1822 = vmatprep.subr.bf16.mxu0 0
    %1823 = vmatpush1.bf16.msra.mxu0 %v1799
    %1824 = vmatprep.subr.bf16.mxu0 0
    %1825 = vmatpush1.bf16.msra.mxu0 0
    %1826 = vmatprep.subr.bf16.mxu0 0
    %1827 = vmatpush1.bf16.msra.mxu0 0
    %1828 = vmatprep.subr.bf16.mxu0 0
    %1829 = vmatpush1.bf16.msra.mxu0 0
    %1830 = vmatprep.subr.bf16.mxu0 0
    %1831 = vmatpush1.bf16.msra.mxu0 0
    %1832 = vmatprep.subr.bf16.mxu0 0
    %1833 = vmatpush1.bf16.msra.mxu0 0
    %1834 = vmatprep.subr.bf16.mxu0 0
    %1835 = vmatpush1.bf16.msra.mxu0 0
    %1836 = vmatprep.subr.bf16.mxu0 0
    %1837 = vmatpush1.bf16.msra.mxu0 0
    %1838 = vmatprep.subr.bf16.mxu0 0
    %1839 = vmatpush1.bf16.msra.mxu0 0
    %1840 = vmatprep.mubr.bf16.mxu0 0
    %1841 = vmatmul.mubr.bf16.gmra.mrb[0].mxu0 %v1776
    %v1842 = vpop.f32.mrb[0].mxu0
    %v1843 = vadd.f32 0.0, %v1842
    %v1844 = vpop.f32.mrb[0].mxu0
    %v1845 = vpop.f32.mrb[0].mxu0
    %v1846 = vadd.f32 0.0, %v1845
    %v1847 = vpop.f32.mrb[0].mxu0
    %1848 = vmatprep.mubr.bf16.mxu0 0
    %1849 = vmatmul.mubr.bf16.gmra.mrb[0].mxu0 %v1777
    %v1850 = vpop.f32.mrb[0].mxu0
    %v1851 = vadd.f32 0.0, %v1850
    %v1852 = vpop.f32.mrb[0].mxu0
    %v1853 = vpop.f32.mrb[0].mxu0
    %v1854 = vadd.f32 0.0, %v1853
    %v1855 = vpop.f32.mrb[0].mxu0
    %1856 = vmatprep.mubr.bf16.mxu0 0
    %1857 = vmatmul.mubr.bf16.gmra.mrb[0].mxu0 %v1778
    %v1858 = vpop.f32.mrb[0].mxu0
    %v1859 = vadd.f32 0.0, %v1858
    %v1860 = vpop.f32.mrb[0].mxu0
    %v1861 = vpop.f32.mrb[0].mxu0
    %v1862 = vadd.f32 0.0, %v1861
    %v1863 = vpop.f32.mrb[0].mxu0
    %1864 = vmatprep.mubr.bf16.mxu0 0
    %1865 = vmatmul.mubr.bf16.gmra.mrb[0].mxu0 %v1779
    %v1866 = vpop.f32.mrb[0].mxu0
    %v1867 = vadd.f32 0.0, %v1866
    %v1868 = vpop.f32.mrb[0].mxu0
    %v1869 = vpop.f32.mrb[0].mxu0
    %v1870 = vadd.f32 0.0, %v1869
    %v1871 = vpop.f32.mrb[0].mxu0
    %1872 = vmatprep.mubr.bf16.mxu0 0
    %1873 = vmatmul.mubr.bf16.gmra.mrb[0].mxu0 %v1780
    %v1874 = vpop.f32.mrb[0].mxu0
    %v1875 = vadd.f32 0.0, %v1874
    %v1876 = vpop.f32.mrb[0].mxu0
    %v1877 = vpop.f32.mrb[0].mxu0
    %v1878 = vadd.f32 0.0, %v1877
    %v1879 = vpop.f32.mrb[0].mxu0
    %1880 = vmatprep.mubr.bf16.mxu0 0
    %1881 = vmatmul.mubr.bf16.gmra.mrb[0].mxu0 %v1781
    %v1882 = vpop.f32.mrb[0].mxu0
    %v1883 = vadd.f32 0.0, %v1882
    %v1884 = vpop.f32.mrb[0].mxu0
    %v1885 = vpop.f32.mrb[0].mxu0
    %v1886 = vadd.f32 0.0, %v1885
    %v1887 = vpop.f32.mrb[0].mxu0
    %1888 = vmatprep.mubr.bf16.mxu0 0
    %1889 = vmatmul.mubr.bf16.gmra.mrb[0].mxu0 %v1782
    %v1890 = vpop.f32.mrb[0].mxu0
    %v1891 = vadd.f32 0.0, %v1890
    %v1892 = vpop.f32.mrb[0].mxu0
    %v1893 = vpop.f32.mrb[0].mxu0
    %v1894 = vadd.f32 0.0, %v1893
    %v1895 = vpop.f32.mrb[0].mxu0
    %1896 = vmatprep.mubr.bf16.mxu0 0
    %1897 = vmatmul.mubr.bf16.gmra.mrb[0].mxu0 %v1783
    %v1898 = vpop.f32.mrb[0].mxu0
    %v1899 = vadd.f32 0.0, %v1898
    %v1900 = vpop.f32.mrb[0].mxu0
    %v1901 = vpop.f32.mrb[0].mxu0
    %v1902 = vadd.f32 0.0, %v1901
    %v1903 = vpop.f32.mrb[0].mxu0
    %1904 = vdwg.mxu0
    %v1905 = vpack.c.bf16 %v1846, %v1843
    %v1906 = vpack.c.bf16 %v1854, %v1851
    %v1907 = vpack.c.bf16 %v1862, %v1859
    %v1908 = vpack.c.bf16 %v1870, %v1867
    %v1909 = vpack.c.bf16 %v1878, %v1875
    %v1910 = vpack.c.bf16 %v1886, %v1883
    %v1911 = vpack.c.bf16 %v1894, %v1891
    %v1912 = vpack.c.bf16 %v1902, %v1899
    %v1914 = vsel %vm287, %v1905, 0
    %v1917 = vsel %vm287, %v1906, 0
    %v1920 = vsel %vm287, %v1907, 0
    %v1923 = vsel %vm287, %v1908, 0
    %v1926 = vsel %vm287, %v1909, 0
    %v1929 = vsel %vm287, %v1910, 0
    %v1932 = vsel %vm287, %v1911, 0
    %v1935 = vsel %vm287, %v1912, 0
    %v1938 = vsel %vm1213, %v237, 0
    %1940 = vmatprep.subr.bf16.mxu0 0
    %1941 = vmatpush1.bf16.msra.mxu0 %v1938
    %1942 = vmatprep.subr.bf16.mxu0 0
    %1943 = vmatpush1.bf16.msra.mxu0 0
    %1944 = vmatprep.subr.bf16.mxu0 0
    %1945 = vmatpush1.bf16.msra.mxu0 0
    %1946 = vmatprep.subr.bf16.mxu0 0
    %1947 = vmatpush1.bf16.msra.mxu0 0
    %1948 = vmatprep.subr.bf16.mxu0 0
    %1949 = vmatpush1.bf16.msra.mxu0 0
    %1950 = vmatprep.subr.bf16.mxu0 0
    %1951 = vmatpush1.bf16.msra.mxu0 0
    %1952 = vmatprep.subr.bf16.mxu0 0
    %1953 = vmatpush1.bf16.msra.mxu0 0
    %1954 = vmatprep.subr.bf16.mxu0 0
    %1955 = vmatpush1.bf16.msra.mxu0 0
    %1956 = vmatprep.subr.bf16.mxu0 0
    %1957 = vmatpush1.bf16.msra.mxu0 0
    %1958 = vmatprep.subr.bf16.mxu0 0
    %1959 = vmatpush1.bf16.msra.mxu0 0
    %1960 = vmatprep.subr.bf16.mxu0 0
    %1961 = vmatpush1.bf16.msra.mxu0 0
    %1962 = vmatprep.subr.bf16.mxu0 0
    %1963 = vmatpush1.bf16.msra.mxu0 0
    %1964 = vmatprep.subr.bf16.mxu0 0
    %1965 = vmatpush1.bf16.msra.mxu0 0
    %1966 = vmatprep.subr.bf16.mxu0 0
    %1967 = vmatpush1.bf16.msra.mxu0 0
    %1968 = vmatprep.subr.bf16.mxu0 0
    %1969 = vmatpush1.bf16.msra.mxu0 0
    %1970 = vmatprep.subr.bf16.mxu0 0
    %1971 = vmatpush1.bf16.msra.mxu0 0
    %1972 = vmatprep.mubr.bf16.mxu0 0
    %1973 = vmatmul.mubr.bf16.gmra.mrb[0].mxu0 %v1914
    %v1974 = vpop.f32.mrb[0].mxu0
    %v1975 = vadd.f32 0.0, %v1974
    %v1976 = vpop.f32.mrb[0].mxu0
    %v1977 = vpop.f32.mrb[0].mxu0
    %v1978 = vadd.f32 0.0, %v1977
    %v1979 = vpop.f32.mrb[0].mxu0
    %1980 = vmatprep.mubr.bf16.mxu0 0
    %1981 = vmatmul.mubr.bf16.gmra.mrb[0].mxu0 %v1917
    %v1982 = vpop.f32.mrb[0].mxu0
    %v1983 = vadd.f32 0.0, %v1982
    %v1984 = vpop.f32.mrb[0].mxu0
    %v1985 = vpop.f32.mrb[0].mxu0
    %v1986 = vadd.f32 0.0, %v1985
    %v1987 = vpop.f32.mrb[0].mxu0
    %1988 = vmatprep.mubr.bf16.mxu0 0
    %1989 = vmatmul.mubr.bf16.gmra.mrb[0].mxu0 %v1920
    %v1990 = vpop.f32.mrb[0].mxu0
    %v1991 = vadd.f32 0.0, %v1990
    %v1992 = vpop.f32.mrb[0].mxu0
    %v1993 = vpop.f32.mrb[0].mxu0
    %v1994 = vadd.f32 0.0, %v1993
    %v1995 = vpop.f32.mrb[0].mxu0
    %1996 = vmatprep.mubr.bf16.mxu0 0
    %1997 = vmatmul.mubr.bf16.gmra.mrb[0].mxu0 %v1923
    %v1998 = vpop.f32.mrb[0].mxu0
    %v1999 = vadd.f32 0.0, %v1998
    %v2000 = vpop.f32.mrb[0].mxu0
    %v2001 = vpop.f32.mrb[0].mxu0
    %v2002 = vadd.f32 0.0, %v2001
    %v2003 = vpop.f32.mrb[0].mxu0
    %2004 = vmatprep.mubr.bf16.mxu0 0
    %2005 = vmatmul.mubr.bf16.gmra.mrb[0].mxu0 %v1926
    %v2006 = vpop.f32.mrb[0].mxu0
    %v2007 = vadd.f32 0.0, %v2006
    %v2008 = vpop.f32.mrb[0].mxu0
    %v2009 = vpop.f32.mrb[0].mxu0
    %v2010 = vadd.f32 0.0, %v2009
    %v2011 = vpop.f32.mrb[0].mxu0
    %2012 = vmatprep.mubr.bf16.mxu0 0
    %2013 = vmatmul.mubr.bf16.gmra.mrb[0].mxu0 %v1929
    %v2014 = vpop.f32.mrb[0].mxu0
    %v2015 = vadd.f32 0.0, %v2014
    %v2016 = vpop.f32.mrb[0].mxu0
    %v2017 = vpop.f32.mrb[0].mxu0
    %v2018 = vadd.f32 0.0, %v2017
    %v2019 = vpop.f32.mrb[0].mxu0
    %2020 = vmatprep.mubr.bf16.mxu0 0
    %2021 = vmatmul.mubr.bf16.gmra.mrb[0].mxu0 %v1932
    %v2022 = vpop.f32.mrb[0].mxu0
    %v2023 = vadd.f32 0.0, %v2022
    %v2024 = vpop.f32.mrb[0].mxu0
    %v2025 = vpop.f32.mrb[0].mxu0
    %v2026 = vadd.f32 0.0, %v2025
    %v2027 = vpop.f32.mrb[0].mxu0
    %2028 = vmatprep.mubr.bf16.mxu0 0
    %2029 = vmatmul.mubr.bf16.gmra.mrb[0].mxu0 %v1935
    %v2030 = vpop.f32.mrb[0].mxu0
    %v2031 = vadd.f32 0.0, %v2030
    %v2032 = vpop.f32.mrb[0].mxu0
    %v2033 = vpop.f32.mrb[0].mxu0
    %v2034 = vadd.f32 0.0, %v2033
    %v2035 = vpop.f32.mrb[0].mxu0
    %2036 = vdwg.mxu0
    %v2037 = vadd.f32 %v1376, %v1975
    %v2038 = vadd.f32 %v1379, %v1978
    %v2039 = vadd.f32 %v1384, %v1983
    %v2040 = vadd.f32 %v1387, %v1986
    %v2041 = vadd.f32 %v1392, %v1991
    %v2042 = vadd.f32 %v1395, %v1994
    %v2043 = vadd.f32 %v1400, %v1999
    %v2044 = vadd.f32 %v1403, %v2002
    %v2045 = vadd.f32 %v1408, %v2007
    %v2046 = vadd.f32 %v1411, %v2010
    %v2047 = vadd.f32 %v1416, %v2015
    %v2048 = vadd.f32 %v1419, %v2018
    %v2049 = vadd.f32 %v1424, %v2023
    %v2050 = vadd.f32 %v1427, %v2026
    %v2051 = vadd.f32 %v1432, %v2031
    %v2052 = vadd.f32 %v1435, %v2034
    %s2053 = scalar_lea.vmem [#allocation5], 384
    %v2054 = vld [vmem:[%s2053] sm:$0xff]
    %v2055 = vld [vmem:[%s2053 + $0x8] sm:$0xff]
    %v2056 = vld [vmem:[%s2053 + $0x10] sm:$0xff]
    %v2057 = vld [vmem:[%s2053 + $0x18] sm:$0xff]
    %v2058 = vld [vmem:[%s2053 + $0x20] sm:$0xff]
    %v2059 = vld [vmem:[%s2053 + $0x28] sm:$0xff]
    %v2060 = vld [vmem:[%s2053 + $0x30] sm:$0xff]
    %v2061 = vld [vmem:[%s2053 + $0x38] sm:$0xff]
    %v2062 = vld [vmem:[%s2053 + $0x40] sm:$0xff]
    %v2063 = vld [vmem:[%s2053 + $0x48] sm:$0xff]
    %v2064 = vld [vmem:[%s2053 + $0x50] sm:$0xff]
    %v2065 = vld [vmem:[%s2053 + $0x58] sm:$0xff]
    %v2066 = vld [vmem:[%s2053 + $0x60] sm:$0xff]
    %v2067 = vld [vmem:[%s2053 + $0x68] sm:$0xff]
    %v2068 = vld [vmem:[%s2053 + $0x70] sm:$0xff]
    %v2069 = vld [vmem:[%s2053 + $0x78] sm:$0xff]
    %2070 = vrot.lane.b32.xlu0 %v239, 104
    %v2071 = vpop.permute.xlu0 %2070
    %2072 = vrot.lane.b32.xlu0 %v240, 104
    %v2073 = vpop.permute.xlu0 %2072
    %2074 = vrot.lane.b32.xlu0 %v241, 104
    %v2075 = vpop.permute.xlu0 %2074
    %2076 = vrot.lane.b32.xlu0 %v242, 104
    %v2077 = vpop.permute.xlu0 %2076
    %2078 = vrot.lane.b32.xlu0 %v243, 104
    %v2079 = vpop.permute.xlu0 %2078
    %2080 = vrot.lane.b32.xlu0 %v244, 104
    %v2081 = vpop.permute.xlu0 %2080
    %2082 = vrot.lane.b32.xlu0 %v245, 104
    %v2083 = vpop.permute.xlu0 %2082
    %2084 = vrot.lane.b32.xlu0 %v246, 104
    %v2085 = vpop.permute.xlu0 %2084
    %2086 = vrot.lane.b32.xlu0 %v239, 72
    %v2087 = vpop.permute.xlu0 %2086
    %2088 = vrot.lane.b32.xlu0 %v240, 72
    %v2089 = vpop.permute.xlu0 %2088
    %2090 = vrot.lane.b32.xlu0 %v241, 72
    %v2091 = vpop.permute.xlu0 %2090
    %2092 = vrot.lane.b32.xlu0 %v242, 72
    %v2093 = vpop.permute.xlu0 %2092
    %2094 = vrot.lane.b32.xlu0 %v243, 72
    %v2095 = vpop.permute.xlu0 %2094
    %2096 = vrot.lane.b32.xlu0 %v244, 72
    %v2097 = vpop.permute.xlu0 %2096
    %2098 = vrot.lane.b32.xlu0 %v245, 72
    %v2099 = vpop.permute.xlu0 %2098
    %2100 = vrot.lane.b32.xlu0 %v246, 72
    %v2101 = vpop.permute.xlu0 %2100
    %v2103 = vsel %vm287, %v2071, 0
    %v2106 = vsel %vm287, %v2073, 0
    %v2109 = vsel %vm287, %v2075, 0
    %v2112 = vsel %vm287, %v2077, 0
    %v2115 = vsel %vm287, %v2079, 0
    %v2118 = vsel %vm287, %v2081, 0
    %v2121 = vsel %vm287, %v2083, 0
    %v2124 = vsel %vm287, %v2085, 0
    %v2127 = vsel %vm287, %v2087, 0
    %v2130 = vsel %vm287, %v2089, 0
    %v2133 = vsel %vm287, %v2091, 0
    %v2136 = vsel %vm287, %v2093, 0
    %v2139 = vsel %vm287, %v2095, 0
    %v2142 = vsel %vm287, %v2097, 0
    %v2145 = vsel %vm287, %v2099, 0
    %v2148 = vsel %vm287, %v2101, 0
    %2150 = vmatprep.subr.bf16.mxu0 0
    %2151 = vmatpush1.bf16.xpose.msra.mxu0 %v2127
    %2152 = vmatprep.subr.bf16.mxu0 0
    %2153 = vmatpush1.bf16.xpose.msra.mxu0 %v2130
    %2154 = vmatprep.subr.bf16.mxu0 0
    %2155 = vmatpush1.bf16.xpose.msra.mxu0 %v2133
    %2156 = vmatprep.subr.bf16.mxu0 0
    %2157 = vmatpush1.bf16.xpose.msra.mxu0 %v2136
    %2158 = vmatprep.subr.bf16.mxu0 0
    %2159 = vmatpush1.bf16.xpose.msra.mxu0 %v2139
    %2160 = vmatprep.subr.bf16.mxu0 0
    %2161 = vmatpush1.bf16.xpose.msra.mxu0 %v2142
    %2162 = vmatprep.subr.bf16.mxu0 0
    %2163 = vmatpush1.bf16.xpose.msra.mxu0 %v2145
    %2164 = vmatprep.subr.bf16.mxu0 0
    %2165 = vmatpush1.bf16.xpose.msra.mxu0 %v2148
    %2166 = vmatprep.subr.bf16.mxu0 0
    %2167 = vmatpush1.bf16.xpose.msra.mxu0 0
    %2168 = vmatprep.subr.bf16.mxu0 0
    %2169 = vmatpush1.bf16.xpose.msra.mxu0 0
    %2170 = vmatprep.subr.bf16.mxu0 0
    %2171 = vmatpush1.bf16.xpose.msra.mxu0 0
    %2172 = vmatprep.subr.bf16.mxu0 0
    %2173 = vmatpush1.bf16.xpose.msra.mxu0 0
    %2174 = vmatprep.subr.bf16.mxu0 0
    %2175 = vmatpush1.bf16.xpose.msra.mxu0 0
    %2176 = vmatprep.subr.bf16.mxu0 0
    %2177 = vmatpush1.bf16.xpose.msra.mxu0 0
    %2178 = vmatprep.subr.bf16.mxu0 0
    %2179 = vmatpush1.bf16.xpose.msra.mxu0 0
    %2180 = vmatprep.subr.bf16.mxu0 0
    %2181 = vmatpush1.bf16.xpose.msra.mxu0 0
    %2182 = vmatprep.mubr.bf16.mxu0 0
    %2183 = vmatmul.mubr.bf16.gmra.mrb[0].mxu0 %v2103
    %v2184 = vpop.f32.mrb[0].mxu0
    %v2185 = vadd.f32 %v2054, %v2184
    %v2186 = vpop.f32.mrb[0].mxu0
    %v2187 = vpop.f32.mrb[0].mxu0
    %v2188 = vadd.f32 %v2055, %v2187
    %v2189 = vpop.f32.mrb[0].mxu0
    %2190 = vmatprep.mubr.bf16.mxu0 0
    %2191 = vmatmul.mubr.bf16.gmra.mrb[0].mxu0 %v2106
    %v2192 = vpop.f32.mrb[0].mxu0
    %v2193 = vadd.f32 %v2056, %v2192
    %v2194 = vpop.f32.mrb[0].mxu0
    %v2195 = vpop.f32.mrb[0].mxu0
    %v2196 = vadd.f32 %v2057, %v2195
    %v2197 = vpop.f32.mrb[0].mxu0
    %2198 = vmatprep.mubr.bf16.mxu0 0
    %2199 = vmatmul.mubr.bf16.gmra.mrb[0].mxu0 %v2109
    %v2200 = vpop.f32.mrb[0].mxu0
    %v2201 = vadd.f32 %v2058, %v2200
    %v2202 = vpop.f32.mrb[0].mxu0
    %v2203 = vpop.f32.mrb[0].mxu0
    %v2204 = vadd.f32 %v2059, %v2203
    %v2205 = vpop.f32.mrb[0].mxu0
    %2206 = vmatprep.mubr.bf16.mxu0 0
    %2207 = vmatmul.mubr.bf16.gmra.mrb[0].mxu0 %v2112
    %v2208 = vpop.f32.mrb[0].mxu0
    %v2209 = vadd.f32 %v2060, %v2208
    %v2210 = vpop.f32.mrb[0].mxu0
    %v2211 = vpop.f32.mrb[0].mxu0
    %v2212 = vadd.f32 %v2061, %v2211
    %v2213 = vpop.f32.mrb[0].mxu0
    %2214 = vmatprep.mubr.bf16.mxu0 0
    %2215 = vmatmul.mubr.bf16.gmra.mrb[0].mxu0 %v2115
    %v2216 = vpop.f32.mrb[0].mxu0
    %v2217 = vadd.f32 %v2062, %v2216
    %v2218 = vpop.f32.mrb[0].mxu0
    %v2219 = vpop.f32.mrb[0].mxu0
    %v2220 = vadd.f32 %v2063, %v2219
    %v2221 = vpop.f32.mrb[0].mxu0
    %2222 = vmatprep.mubr.bf16.mxu0 0
    %2223 = vmatmul.mubr.bf16.gmra.mrb[0].mxu0 %v2118
    %v2224 = vpop.f32.mrb[0].mxu0
    %v2225 = vadd.f32 %v2064, %v2224
    %v2226 = vpop.f32.mrb[0].mxu0
    %v2227 = vpop.f32.mrb[0].mxu0
    %v2228 = vadd.f32 %v2065, %v2227
    %v2229 = vpop.f32.mrb[0].mxu0
    %2230 = vmatprep.mubr.bf16.mxu0 0
    %2231 = vmatmul.mubr.bf16.gmra.mrb[0].mxu0 %v2121
    %v2232 = vpop.f32.mrb[0].mxu0
    %v2233 = vadd.f32 %v2066, %v2232
    %v2234 = vpop.f32.mrb[0].mxu0
    %v2235 = vpop.f32.mrb[0].mxu0
    %v2236 = vadd.f32 %v2067, %v2235
    %v2237 = vpop.f32.mrb[0].mxu0
    %2238 = vmatprep.mubr.bf16.mxu0 0
    %2239 = vmatmul.mubr.bf16.gmra.mrb[0].mxu0 %v2124
    %v2240 = vpop.f32.mrb[0].mxu0
    %v2241 = vadd.f32 %v2068, %v2240
    %v2242 = vpop.f32.mrb[0].mxu0
    %v2243 = vpop.f32.mrb[0].mxu0
    %v2244 = vadd.f32 %v2069, %v2243
    %v2245 = vpop.f32.mrb[0].mxu0
    %2246 = vdwg.mxu0
    %2247 = vmax.xlane.f32.xlu0 %v2185
    %v2248 = vpop.xlane.xlu0 %2247
    %2249 = vmax.xlane.f32.xlu0 %v2188
    %v2250 = vpop.xlane.xlu0 %2249
    %2251 = vmax.xlane.f32.xlu0 %v2193
    %v2252 = vpop.xlane.xlu0 %2251
    %2253 = vmax.xlane.f32.xlu0 %v2196
    %v2254 = vpop.xlane.xlu0 %2253
    %2255 = vmax.xlane.f32.xlu0 %v2201
    %v2256 = vpop.xlane.xlu0 %2255
    %2257 = vmax.xlane.f32.xlu0 %v2204
    %v2258 = vpop.xlane.xlu0 %2257
    %2259 = vmax.xlane.f32.xlu0 %v2209
    %v2260 = vpop.xlane.xlu0 %2259
    %2261 = vmax.xlane.f32.xlu0 %v2212
    %v2262 = vpop.xlane.xlu0 %2261
    %2263 = vmax.xlane.f32.xlu0 %v2217
    %v2264 = vpop.xlane.xlu0 %2263
    %2265 = vmax.xlane.f32.xlu0 %v2220
    %v2266 = vpop.xlane.xlu0 %2265
    %2267 = vmax.xlane.f32.xlu0 %v2225
    %v2268 = vpop.xlane.xlu0 %2267
    %2269 = vmax.xlane.f32.xlu0 %v2228
    %v2270 = vpop.xlane.xlu0 %2269
    %2271 = vmax.xlane.f32.xlu0 %v2233
    %v2272 = vpop.xlane.xlu0 %2271
    %2273 = vmax.xlane.f32.xlu0 %v2236
    %v2274 = vpop.xlane.xlu0 %2273
    %2275 = vmax.xlane.f32.xlu0 %v2241
    %v2276 = vpop.xlane.xlu0 %2275
    %2277 = vmax.xlane.f32.xlu0 %v2244
    %v2278 = vpop.xlane.xlu0 %2277
    %v2279 = vsub.f32 %v2185, %v2248
    %v2280 = vsub.f32 %v2188, %v2250
    %v2281 = vsub.f32 %v2193, %v2252
    %v2282 = vsub.f32 %v2196, %v2254
    %v2283 = vsub.f32 %v2201, %v2256
    %v2284 = vsub.f32 %v2204, %v2258
    %v2285 = vsub.f32 %v2209, %v2260
    %v2286 = vsub.f32 %v2212, %v2262
    %v2287 = vsub.f32 %v2217, %v2264
    %v2288 = vsub.f32 %v2220, %v2266
    %v2289 = vsub.f32 %v2225, %v2268
    %v2290 = vsub.f32 %v2228, %v2270
    %v2291 = vsub.f32 %v2233, %v2272
    %v2292 = vsub.f32 %v2236, %v2274
    %v2293 = vsub.f32 %v2241, %v2276
    %v2294 = vsub.f32 %v2244, %v2278
    %v2295 = vmul.f32 %v2279, 1.442695
    %v2296 = vpow.pop %v2295
    %v2297 = vmul.f32 %v2280, 1.442695
    %v2298 = vpow.pop %v2297
    %v2299 = vmul.f32 %v2281, 1.442695
    %v2300 = vpow.pop %v2299
    %v2301 = vmul.f32 %v2282, 1.442695
    %v2302 = vpow.pop %v2301
    %v2303 = vmul.f32 %v2283, 1.442695
    %v2304 = vpow.pop %v2303
    %v2305 = vmul.f32 %v2284, 1.442695
    %v2306 = vpow.pop %v2305
    %v2307 = vmul.f32 %v2285, 1.442695
    %v2308 = vpow.pop %v2307
    %v2309 = vmul.f32 %v2286, 1.442695
    %v2310 = vpow.pop %v2309
    %v2311 = vmul.f32 %v2287, 1.442695
    %v2312 = vpow.pop %v2311
    %v2313 = vmul.f32 %v2288, 1.442695
    %v2314 = vpow.pop %v2313
    %v2315 = vmul.f32 %v2289, 1.442695
    %v2316 = vpow.pop %v2315
    %v2317 = vmul.f32 %v2290, 1.442695
    %v2318 = vpow.pop %v2317
    %v2319 = vmul.f32 %v2291, 1.442695
    %v2320 = vpow.pop %v2319
    %v2321 = vmul.f32 %v2292, 1.442695
    %v2322 = vpow.pop %v2321
    %v2323 = vmul.f32 %v2293, 1.442695
    %v2324 = vpow.pop %v2323
    %v2325 = vmul.f32 %v2294, 1.442695
    %v2326 = vpow.pop %v2325
    %2327 = vadd.xlane.f32.xlu0 %v2296
    %v2328 = vpop.xlane.xlu0 %2327
    %2329 = vadd.xlane.f32.xlu0 %v2298
    %v2330 = vpop.xlane.xlu0 %2329
    %2331 = vadd.xlane.f32.xlu0 %v2300
    %v2332 = vpop.xlane.xlu0 %2331
    %2333 = vadd.xlane.f32.xlu0 %v2302
    %v2334 = vpop.xlane.xlu0 %2333
    %2335 = vadd.xlane.f32.xlu0 %v2304
    %v2336 = vpop.xlane.xlu0 %2335
    %2337 = vadd.xlane.f32.xlu0 %v2306
    %v2338 = vpop.xlane.xlu0 %2337
    %2339 = vadd.xlane.f32.xlu0 %v2308
    %v2340 = vpop.xlane.xlu0 %2339
    %2341 = vadd.xlane.f32.xlu0 %v2310
    %v2342 = vpop.xlane.xlu0 %2341
    %2343 = vadd.xlane.f32.xlu0 %v2312
    %v2344 = vpop.xlane.xlu0 %2343
    %2345 = vadd.xlane.f32.xlu0 %v2314
    %v2346 = vpop.xlane.xlu0 %2345
    %2347 = vadd.xlane.f32.xlu0 %v2316
    %v2348 = vpop.xlane.xlu0 %2347
    %2349 = vadd.xlane.f32.xlu0 %v2318
    %v2350 = vpop.xlane.xlu0 %2349
    %2351 = vadd.xlane.f32.xlu0 %v2320
    %v2352 = vpop.xlane.xlu0 %2351
    %2353 = vadd.xlane.f32.xlu0 %v2322
    %v2354 = vpop.xlane.xlu0 %2353
    %2355 = vadd.xlane.f32.xlu0 %v2324
    %v2356 = vpop.xlane.xlu0 %2355
    %2357 = vadd.xlane.f32.xlu0 %v2326
    %v2358 = vpop.xlane.xlu0 %2357
    %v2359 = vrcp.pop %v2328
    %v2360 = vrcp.pop %v2330
    %v2361 = vrcp.pop %v2332
    %v2362 = vrcp.pop %v2334
    %v2363 = vrcp.pop %v2336
    %v2364 = vrcp.pop %v2338
    %v2365 = vrcp.pop %v2340
    %v2366 = vrcp.pop %v2342
    %v2367 = vrcp.pop %v2344
    %v2368 = vrcp.pop %v2346
    %v2369 = vrcp.pop %v2348
    %v2370 = vrcp.pop %v2350
    %v2371 = vrcp.pop %v2352
    %v2372 = vrcp.pop %v2354
    %v2373 = vrcp.pop %v2356
    %v2374 = vrcp.pop %v2358
    %v2375 = vmul.f32 %v2296, %v2359
    %v2376 = vmul.f32 %v2298, %v2360
    %v2377 = vmul.f32 %v2300, %v2361
    %v2378 = vmul.f32 %v2302, %v2362
    %v2379 = vmul.f32 %v2304, %v2363
    %v2380 = vmul.f32 %v2306, %v2364
    %v2381 = vmul.f32 %v2308, %v2365
    %v2382 = vmul.f32 %v2310, %v2366
    %v2383 = vmul.f32 %v2312, %v2367
    %v2384 = vmul.f32 %v2314, %v2368
    %v2385 = vmul.f32 %v2316, %v2369
    %v2386 = vmul.f32 %v2318, %v2370
    %v2387 = vmul.f32 %v2320, %v2371
    %v2388 = vmul.f32 %v2322, %v2372
    %v2389 = vmul.f32 %v2324, %v2373
    %v2390 = vmul.f32 %v2326, %v2374
    %v2391 = vpack.c.bf16 %v2376, %v2375
    %v2392 = vpack.c.bf16 %v2378, %v2377
    %v2393 = vpack.c.bf16 %v2380, %v2379
    %v2394 = vpack.c.bf16 %v2382, %v2381
    %v2395 = vpack.c.bf16 %v2384, %v2383
    %v2396 = vpack.c.bf16 %v2386, %v2385
    %v2397 = vpack.c.bf16 %v2388, %v2387
    %v2398 = vpack.c.bf16 %v2390, %v2389
    %2399 = vrot.lane.b32.xlu0 %v239, 40
    %v2400 = vpop.permute.xlu0 %2399
    %2401 = vrot.lane.b32.xlu0 %v240, 40
    %v2402 = vpop.permute.xlu0 %2401
    %2403 = vrot.lane.b32.xlu0 %v241, 40
    %v2404 = vpop.permute.xlu0 %2403
    %2405 = vrot.lane.b32.xlu0 %v242, 40
    %v2406 = vpop.permute.xlu0 %2405
    %2407 = vrot.lane.b32.xlu0 %v243, 40
    %v2408 = vpop.permute.xlu0 %2407
    %2409 = vrot.lane.b32.xlu0 %v244, 40
    %v2410 = vpop.permute.xlu0 %2409
    %2411 = vrot.lane.b32.xlu0 %v245, 40
    %v2412 = vpop.permute.xlu0 %2411
    %2413 = vrot.lane.b32.xlu0 %v246, 40
    %v2414 = vpop.permute.xlu0 %2413
    %2423 = vmatprep.subr.bf16.mxu0 0
    %2424 = vmatpush1.bf16.msra.mxu0 %v2400
    %2425 = vmatprep.subr.bf16.mxu0 0
    %2426 = vmatpush1.bf16.msra.mxu0 %v2402
    %2427 = vmatprep.subr.bf16.mxu0 0
    %2428 = vmatpush1.bf16.msra.mxu0 %v2404
    %2429 = vmatprep.subr.bf16.mxu0 0
    %2430 = vmatpush1.bf16.msra.mxu0 %v2406
    %2431 = vmatprep.subr.bf16.mxu0 0
    %2432 = vmatpush1.bf16.msra.mxu0 %v2408
    %2433 = vmatprep.subr.bf16.mxu0 0
    %2434 = vmatpush1.bf16.msra.mxu0 %v2410
    %2435 = vmatprep.subr.bf16.mxu0 0
    %2436 = vmatpush1.bf16.msra.mxu0 %v2412
    %2437 = vmatprep.subr.bf16.mxu0 0
    %2438 = vmatpush1.bf16.msra.mxu0 %v2414
    %2439 = vmatprep.subr.bf16.mxu0 0
    %2440 = vmatpush1.bf16.msra.mxu0 0
    %2441 = vmatprep.subr.bf16.mxu0 0
    %2442 = vmatpush1.bf16.msra.mxu0 0
    %2443 = vmatprep.subr.bf16.mxu0 0
    %2444 = vmatpush1.bf16.msra.mxu0 0
    %2445 = vmatprep.subr.bf16.mxu0 0
    %2446 = vmatpush1.bf16.msra.mxu0 0
    %2447 = vmatprep.subr.bf16.mxu0 0
    %2448 = vmatpush1.bf16.msra.mxu0 0
    %2449 = vmatprep.subr.bf16.mxu0 0
    %2450 = vmatpush1.bf16.msra.mxu0 0
    %2451 = vmatprep.subr.bf16.mxu0 0
    %2452 = vmatpush1.bf16.msra.mxu0 0
    %2453 = vmatprep.subr.bf16.mxu0 0
    %2454 = vmatpush1.bf16.msra.mxu0 0
    %2455 = vmatprep.mubr.bf16.mxu0 0
    %2456 = vmatmul.mubr.bf16.gmra.mrb[0].mxu0 %v2391
    %v2457 = vpop.f32.mrb[0].mxu0
    %v2458 = vadd.f32 0.0, %v2457
    %v2459 = vpop.f32.mrb[0].mxu0
    %v2460 = vpop.f32.mrb[0].mxu0
    %v2461 = vadd.f32 0.0, %v2460
    %v2462 = vpop.f32.mrb[0].mxu0
    %2463 = vmatprep.mubr.bf16.mxu0 0
    %2464 = vmatmul.mubr.bf16.gmra.mrb[0].mxu0 %v2392
    %v2465 = vpop.f32.mrb[0].mxu0
    %v2466 = vadd.f32 0.0, %v2465
    %v2467 = vpop.f32.mrb[0].mxu0
    %v2468 = vpop.f32.mrb[0].mxu0
    %v2469 = vadd.f32 0.0, %v2468
    %v2470 = vpop.f32.mrb[0].mxu0
    %2471 = vmatprep.mubr.bf16.mxu0 0
    %2472 = vmatmul.mubr.bf16.gmra.mrb[0].mxu0 %v2393
    %v2473 = vpop.f32.mrb[0].mxu0
    %v2474 = vadd.f32 0.0, %v2473
    %v2475 = vpop.f32.mrb[0].mxu0
    %v2476 = vpop.f32.mrb[0].mxu0
    %v2477 = vadd.f32 0.0, %v2476
    %v2478 = vpop.f32.mrb[0].mxu0
    %2479 = vmatprep.mubr.bf16.mxu0 0
    %2480 = vmatmul.mubr.bf16.gmra.mrb[0].mxu0 %v2394
    %v2481 = vpop.f32.mrb[0].mxu0
    %v2482 = vadd.f32 0.0, %v2481
    %v2483 = vpop.f32.mrb[0].mxu0
    %v2484 = vpop.f32.mrb[0].mxu0
    %v2485 = vadd.f32 0.0, %v2484
    %v2486 = vpop.f32.mrb[0].mxu0
    %2487 = vmatprep.mubr.bf16.mxu0 0
    %2488 = vmatmul.mubr.bf16.gmra.mrb[0].mxu0 %v2395
    %v2489 = vpop.f32.mrb[0].mxu0
    %v2490 = vadd.f32 0.0, %v2489
    %v2491 = vpop.f32.mrb[0].mxu0
    %v2492 = vpop.f32.mrb[0].mxu0
    %v2493 = vadd.f32 0.0, %v2492
    %v2494 = vpop.f32.mrb[0].mxu0
    %2495 = vmatprep.mubr.bf16.mxu0 0
    %2496 = vmatmul.mubr.bf16.gmra.mrb[0].mxu0 %v2396
    %v2497 = vpop.f32.mrb[0].mxu0
    %v2498 = vadd.f32 0.0, %v2497
    %v2499 = vpop.f32.mrb[0].mxu0
    %v2500 = vpop.f32.mrb[0].mxu0
    %v2501 = vadd.f32 0.0, %v2500
    %v2502 = vpop.f32.mrb[0].mxu0
    %2503 = vmatprep.mubr.bf16.mxu0 0
    %2504 = vmatmul.mubr.bf16.gmra.mrb[0].mxu0 %v2397
    %v2505 = vpop.f32.mrb[0].mxu0
    %v2506 = vadd.f32 0.0, %v2505
    %v2507 = vpop.f32.mrb[0].mxu0
    %v2508 = vpop.f32.mrb[0].mxu0
    %v2509 = vadd.f32 0.0, %v2508
    %v2510 = vpop.f32.mrb[0].mxu0
    %2511 = vmatprep.mubr.bf16.mxu0 0
    %2512 = vmatmul.mubr.bf16.gmra.mrb[0].mxu0 %v2398
    %v2513 = vpop.f32.mrb[0].mxu0
    %v2514 = vadd.f32 0.0, %v2513
    %v2515 = vpop.f32.mrb[0].mxu0
    %v2516 = vpop.f32.mrb[0].mxu0
    %v2517 = vadd.f32 0.0, %v2516
    %v2518 = vpop.f32.mrb[0].mxu0
    %2519 = vdwg.mxu0
    %v2520 = vpack.c.bf16 %v2461, %v2458
    %v2521 = vpack.c.bf16 %v2469, %v2466
    %v2522 = vpack.c.bf16 %v2477, %v2474
    %v2523 = vpack.c.bf16 %v2485, %v2482
    %v2524 = vpack.c.bf16 %v2493, %v2490
    %v2525 = vpack.c.bf16 %v2501, %v2498
    %v2526 = vpack.c.bf16 %v2509, %v2506
    %v2527 = vpack.c.bf16 %v2517, %v2514
    %v2529 = vsel %vm287, %v2520, 0
    %v2532 = vsel %vm287, %v2521, 0
    %v2535 = vsel %vm287, %v2522, 0
    %v2538 = vsel %vm287, %v2523, 0
    %v2541 = vsel %vm287, %v2524, 0
    %v2544 = vsel %vm287, %v2525, 0
    %v2547 = vsel %vm287, %v2526, 0
    %v2550 = vsel %vm287, %v2527, 0
    %v2553 = vsel %vm1213, %v238, 0
    %2555 = vmatprep.subr.bf16.mxu0 0
    %2556 = vmatpush1.bf16.msra.mxu0 %v2553
    %2557 = vmatprep.subr.bf16.mxu0 0
    %2558 = vmatpush1.bf16.msra.mxu0 0
    %2559 = vmatprep.subr.bf16.mxu0 0
    %2560 = vmatpush1.bf16.msra.mxu0 0
    %2561 = vmatprep.subr.bf16.mxu0 0
    %2562 = vmatpush1.bf16.msra.mxu0 0
    %2563 = vmatprep.subr.bf16.mxu0 0
    %2564 = vmatpush1.bf16.msra.mxu0 0
    %2565 = vmatprep.subr.bf16.mxu0 0
    %2566 = vmatpush1.bf16.msra.mxu0 0
    %2567 = vmatprep.subr.bf16.mxu0 0
    %2568 = vmatpush1.bf16.msra.mxu0 0
    %2569 = vmatprep.subr.bf16.mxu0 0
    %2570 = vmatpush1.bf16.msra.mxu0 0
    %2571 = vmatprep.subr.bf16.mxu0 0
    %2572 = vmatpush1.bf16.msra.mxu0 0
    %2573 = vmatprep.subr.bf16.mxu0 0
    %2574 = vmatpush1.bf16.msra.mxu0 0
    %2575 = vmatprep.subr.bf16.mxu0 0
    %2576 = vmatpush1.bf16.msra.mxu0 0
    %2577 = vmatprep.subr.bf16.mxu0 0
    %2578 = vmatpush1.bf16.msra.mxu0 0
    %2579 = vmatprep.subr.bf16.mxu0 0
    %2580 = vmatpush1.bf16.msra.mxu0 0
    %2581 = vmatprep.subr.bf16.mxu0 0
    %2582 = vmatpush1.bf16.msra.mxu0 0
    %2583 = vmatprep.subr.bf16.mxu0 0
    %2584 = vmatpush1.bf16.msra.mxu0 0
    %2585 = vmatprep.subr.bf16.mxu0 0
    %2586 = vmatpush1.bf16.msra.mxu0 0
    %2587 = vmatprep.mubr.bf16.mxu0 0
    %2588 = vmatmul.mubr.bf16.gmra.mrb[0].mxu0 %v2529
    %v2589 = vpop.f32.mrb[0].mxu0
    %v2590 = vadd.f32 0.0, %v2589
    %v2591 = vpop.f32.mrb[0].mxu0
    %v2592 = vpop.f32.mrb[0].mxu0
    %v2593 = vadd.f32 0.0, %v2592
    %v2594 = vpop.f32.mrb[0].mxu0
    %2595 = vmatprep.mubr.bf16.mxu0 0
    %2596 = vmatmul.mubr.bf16.gmra.mrb[0].mxu0 %v2532
    %v2597 = vpop.f32.mrb[0].mxu0
    %v2598 = vadd.f32 0.0, %v2597
    %v2599 = vpop.f32.mrb[0].mxu0
    %v2600 = vpop.f32.mrb[0].mxu0
    %v2601 = vadd.f32 0.0, %v2600
    %v2602 = vpop.f32.mrb[0].mxu0
    %2603 = vmatprep.mubr.bf16.mxu0 0
    %2604 = vmatmul.mubr.bf16.gmra.mrb[0].mxu0 %v2535
    %v2605 = vpop.f32.mrb[0].mxu0
    %v2606 = vadd.f32 0.0, %v2605
    %v2607 = vpop.f32.mrb[0].mxu0
    %v2608 = vpop.f32.mrb[0].mxu0
    %v2609 = vadd.f32 0.0, %v2608
    %v2610 = vpop.f32.mrb[0].mxu0
    %2611 = vmatprep.mubr.bf16.mxu0 0
    %2612 = vmatmul.mubr.bf16.gmra.mrb[0].mxu0 %v2538
    %v2613 = vpop.f32.mrb[0].mxu0
    %v2614 = vadd.f32 0.0, %v2613
    %v2615 = vpop.f32.mrb[0].mxu0
    %v2616 = vpop.f32.mrb[0].mxu0
    %v2617 = vadd.f32 0.0, %v2616
    %v2618 = vpop.f32.mrb[0].mxu0
    %2619 = vmatprep.mubr.bf16.mxu0 0
    %2620 = vmatmul.mubr.bf16.gmra.mrb[0].mxu0 %v2541
    %v2621 = vpop.f32.mrb[0].mxu0
    %v2622 = vadd.f32 0.0, %v2621
    %v2623 = vpop.f32.mrb[0].mxu0
    %v2624 = vpop.f32.mrb[0].mxu0
    %v2625 = vadd.f32 0.0, %v2624
    %v2626 = vpop.f32.mrb[0].mxu0
    %2627 = vmatprep.mubr.bf16.mxu0 0
    %2628 = vmatmul.mubr.bf16.gmra.mrb[0].mxu0 %v2544
    %v2629 = vpop.f32.mrb[0].mxu0
    %v2630 = vadd.f32 0.0, %v2629
    %v2631 = vpop.f32.mrb[0].mxu0
    %v2632 = vpop.f32.mrb[0].mxu0
    %v2633 = vadd.f32 0.0, %v2632
    %v2634 = vpop.f32.mrb[0].mxu0
    %2635 = vmatprep.mubr.bf16.mxu0 0
    %2636 = vmatmul.mubr.bf16.gmra.mrb[0].mxu0 %v2547
    %v2637 = vpop.f32.mrb[0].mxu0
    %v2638 = vadd.f32 0.0, %v2637
    %v2639 = vpop.f32.mrb[0].mxu0
    %v2640 = vpop.f32.mrb[0].mxu0
    %v2641 = vadd.f32 0.0, %v2640
    %v2642 = vpop.f32.mrb[0].mxu0
    %2643 = vmatprep.mubr.bf16.mxu0 0
    %2644 = vmatmul.mubr.bf16.gmra.mrb[0].mxu0 %v2550
    %v2645 = vpop.f32.mrb[0].mxu0
    %v2646 = vadd.f32 0.0, %v2645
    %v2647 = vpop.f32.mrb[0].mxu0
    %v2648 = vpop.f32.mrb[0].mxu0
    %v2649 = vadd.f32 0.0, %v2648
    %v2650 = vpop.f32.mrb[0].mxu0
    %2651 = vdwg.mxu0
    %v2652 = vadd.f32 %v2037, %v2590
    %v2653 = vadd.f32 %v2038, %v2593
    %v2654 = vadd.f32 %v2039, %v2598
    %v2655 = vadd.f32 %v2040, %v2601
    %v2656 = vadd.f32 %v2041, %v2606
    %v2657 = vadd.f32 %v2042, %v2609
    %v2658 = vadd.f32 %v2043, %v2614
    %v2659 = vadd.f32 %v2044, %v2617
    %v2660 = vadd.f32 %v2045, %v2622
    %v2661 = vadd.f32 %v2046, %v2625
    %v2662 = vadd.f32 %v2047, %v2630
    %v2663 = vadd.f32 %v2048, %v2633
    %v2664 = vadd.f32 %v2049, %v2638
    %v2665 = vadd.f32 %v2050, %v2641
    %v2666 = vadd.f32 %v2051, %v2646
    %v2667 = vadd.f32 %v2052, %v2649
    %v2668 = vld [vmem:[%s5] sm:$0x1]
    %v2670 = vlaneseq
    %v2671 = vshrl.u32 %v2670, 7
    %v2672 = vsub.s32 0, %v2671
    %v2673 = vrot.slane %v2668, %v2672
    %v2675 = vadd.f32 %v2652, %v2673
    %v2676 = vadd.f32 %v2653, %v2673
    %v2677 = vadd.f32 %v2654, %v2673
    %v2678 = vadd.f32 %v2655, %v2673
    %v2679 = vadd.f32 %v2656, %v2673
    %v2680 = vadd.f32 %v2657, %v2673
    %v2681 = vadd.f32 %v2658, %v2673
    %v2682 = vadd.f32 %v2659, %v2673
    %v2683 = vadd.f32 %v2660, %v2673
    %v2684 = vadd.f32 %v2661, %v2673
    %v2685 = vadd.f32 %v2662, %v2673
    %v2686 = vadd.f32 %v2663, %v2673
    %v2687 = vadd.f32 %v2664, %v2673
    %v2688 = vadd.f32 %v2665, %v2673
    %v2689 = vadd.f32 %v2666, %v2673
    %v2690 = vadd.f32 %v2667, %v2673
    %2691 = vst.msk [vmem:[#allocation8] sm:$0xff] %vm113, %v2675
    %2692 = vst.msk [vmem:[#allocation8 + $0x8] sm:$0xff] %vm113, %v2676
    %2693 = vst.msk [vmem:[#allocation8 + $0x10] sm:$0xff] %vm113, %v2677
    %2694 = vst.msk [vmem:[#allocation8 + $0x18] sm:$0xff] %vm113, %v2678
    %2695 = vst.msk [vmem:[#allocation8 + $0x20] sm:$0xff] %vm113, %v2679
    %2696 = vst.msk [vmem:[#allocation8 + $0x28] sm:$0xff] %vm113, %v2680
    %2697 = vst.msk [vmem:[#allocation8 + $0x30] sm:$0xff] %vm113, %v2681
    %2698 = vst.msk [vmem:[#allocation8 + $0x38] sm:$0xff] %vm113, %v2682
    %2699 = vst.msk [vmem:[#allocation8 + $0x40] sm:$0xff] %vm113, %v2683
    %2700 = vst.msk [vmem:[#allocation8 + $0x48] sm:$0xff] %vm113, %v2684
    %2701 = vst.msk [vmem:[#allocation8 + $0x50] sm:$0xff] %vm113, %v2685
    %2702 = vst.msk [vmem:[#allocation8 + $0x58] sm:$0xff] %vm113, %v2686
    %2703 = vst.msk [vmem:[#allocation8 + $0x60] sm:$0xff] %vm113, %v2687
    %2704 = vst.msk [vmem:[#allocation8 + $0x68] sm:$0xff] %vm113, %v2688
    %2705 = vst.msk [vmem:[#allocation8 + $0x70] sm:$0xff] %vm113, %v2689
    %2706 = vst.msk [vmem:[#allocation8 + $0x78] sm:$0xff] %vm113, %v2690
    // Predicated region
    $region38: #{window_attention_pallas.1} parent=1 // pred_check
      _
    $region39: #{window_attention_pallas.1} parent=1 // pred_check_branch
      %2708 = sbr.rel (0) target = $region41
    $region40: #{window_attention_pallas.1} parent=1 // pred_region
      %s2710 = ssub.s32 2048, 2048
      %2711 = vsyncadd [#allocation4], %s2710
      %s2712 = sshll.u32 [#allocation8], 4
      %s2713 = int_to_ptr.vmem [resolvable:$true] %s2712
      %2718 = dma.vmem_to_hbm [thread:$0]  %s2713, 2048, %s6, [#allocation4], 128, 128, 8
    $region41: #{window_attention_pallas.1} parent=1 // pred_fallthru
      _
    // Predicated region
    $region42: #{window_attention_pallas.1} parent=1 // pred_check
      _
    $region43: #{window_attention_pallas.1} parent=1 // pred_check_branch
      %2720 = sbr.rel (0) target = $region45
    $region44: #{window_attention_pallas.1} parent=1 // pred_region
      %2721 = dma.done [#allocation4], 2048
    $region45: #{window_attention_pallas.1} parent=1 // pred_fallthru
      _
    %2722 = vsyncpa [#allocation3], 1
    %2723 = vsyncpa [#allocation6], 1
    %2724 = vsyncpa [#allocation4], 1

</llo_original>
